<compile_context>
chip_gen: v6e
topology: v6e:2x2x1
jax: 0.10.0
libtpu: 0.0.40
codegen_flags: <defaults>
</compile_context>

<pallas_src>
import functools

import jax
import jax.numpy as jnp
from jax.experimental import pallas as pl
from jax.experimental.pallas import tpu as pltpu


def fold_params(p, kernel_size):
    """Fold LayerNorm affine into conv1 and eval-mode BatchNorm into the depthwise conv."""
    eps = 1e-5
    inner = p["w2_T"].shape[0]
    # LayerNorm: y = (xn_raw * g + b) @ W1 + b1 == xn_raw @ (g[:,None]*W1) + (b @ W1 + b1)
    w1 = p["ln_g"].reshape(-1, 1) * p["w1_T"]                 # (D, 2*inner)
    b1 = p["ln_b"].reshape(1, -1) @ p["w1_T"] + p["b1"]       # (1, 2*inner)
    # Eval-mode BatchNorm: BN(acc) = acc*scale + shift, folded into depthwise w/b.
    # TODO(synk): training-mode BatchNorm (batch statistics over B,T) not reproduced.
    scale = p["bn_g"] * jax.lax.rsqrt(p["bn_v"] + eps)        # (1, inner)
    shift = p["bn_b"] - p["bn_m"] * scale                     # (1, inner)
    return dict(
        w1a=w1[:, :inner].astype(jnp.bfloat16),               # value half   (D, inner)
        w1b=w1[:, inner:].astype(jnp.bfloat16),               # gate half    (D, inner)
        b1a=b1[:, :inner],                                    # (1, inner) f32
        b1b=b1[:, inner:],                                    # (1, inner) f32
        w_dw=p["w_dw"] * scale,                               # (K, inner) f32, BN-folded
        b_dw=p["b_dw"] * scale + shift,                       # (1, inner) f32, BN-folded
        w2=p["w2_T"].astype(jnp.bfloat16),                    # (inner, D)
        b2=p["b2"],                                           # (1, D) f32
    )


def _conformer_conv_kernel(
    x_ref, w1a_ref, w1b_ref, b1a_ref, b1b_ref, wdw_ref, bdw_ref, w2_ref, b2_ref,
    out_ref, *, K, pad, T,
):
    eps = 1e-5
    x = x_ref[0]                                              # (T, D) f32

    # LayerNorm statistics (affine already folded into w1/b1 on the host side).
    mean = jnp.mean(x, axis=-1, keepdims=True)
    xc = x - mean
    var = jnp.mean(xc * xc, axis=-1, keepdims=True)
    xn = (xc * jax.lax.rsqrt(var + eps)).astype(jnp.bfloat16)

    # Pointwise Conv1d(dim, 2*inner, 1), split into value / gate halves (bf16 MXU,
    # f32 accumulate).  GLU: out * sigmoid(gate).
    val = jnp.dot(xn, w1a_ref[...], preferred_element_type=jnp.float32) + b1a_ref[...]
    gate = jnp.dot(xn, w1b_ref[...], preferred_element_type=jnp.float32) + b1b_ref[...]
    g = val * jax.nn.sigmoid(gate)                            # (T, inner) f32

    # Depthwise Conv1d(inner, inner, K, groups=inner, padding=K//2) with BN folded in.
    # Each tap is an XLU sublane roll of g plus a boundary mask (zero padding).
    C = g.shape[1]
    row = jax.lax.broadcasted_iota(jnp.int32, (T, C), 0)
    acc = jnp.zeros((T, C), jnp.float32)
    for k in range(K):                                        # static, unrolled taps
        s = k - pad                                           # tap offset along T
        if s <= -T or s >= T:
            continue                                          # tap entirely in zero padding
        if s == 0:
            tap = g
        else:
            tap = pltpu.roll(g, shift=(-s) % T, axis=0)
            tap = jnp.where((row >= -s) & (row < T - s), tap, 0.0)
        acc = acc + tap * wdw_ref[pl.ds(k, 1), :]
    z = acc + bdw_ref[...]

    # Swish.
    z = z * jax.nn.sigmoid(z)

    # Pointwise Conv1d(inner, dim, 1) (bf16 MXU, f32 accumulate).
    o = jnp.dot(z.astype(jnp.bfloat16), w2_ref[...],
                preferred_element_type=jnp.float32) + b2_ref[...]
    # TODO(synk): nn.Dropout is identity at inference; training-mode RNG masking not reproduced.
    out_ref[0] = o.astype(out_ref.dtype)


def conformer_conv_module(x, params, kernel_size):
    B, T, D = x.shape
    inner = params["w2_T"].shape[0]
    pad = kernel_size // 2
    fp = fold_params(params, kernel_size)

    kern = functools.partial(_conformer_conv_kernel, K=kernel_size, pad=pad, T=T)

    args = (x, fp["w1a"], fp["w1b"], fp["b1a"], fp["b1b"],
            fp["w_dw"], fp["b_dw"], fp["w2"], fp["b2"])

    in_specs = [pl.BlockSpec((1, T, D), lambda b: (b, 0, 0))]
    for a in args[1:]:
        in_specs.append(pl.BlockSpec(a.shape, lambda b, n=a.ndim: (0,) * n))

    flops = int(2 * B * T * D * 2 * inner          # pointwise conv 1 (both halves)
                + 2 * B * T * inner * kernel_size  # depthwise conv
                + 2 * B * T * inner * D)           # pointwise conv 2
    bytes_accessed = int((x.size + B * T * D) * 4
                         + sum(int(a.size) * int(a.dtype.itemsize) for a in args[1:]))
    cost = pl.CostEstimate(flops=flops,
                           transcendentals=int(2 * B * T * inner),
                           bytes_accessed=bytes_accessed)

    return pl.pallas_call(
        kern,
        out_shape=jax.ShapeDtypeStruct((B, T, D), x.dtype),
        grid=(B,),
        in_specs=in_specs,
        out_specs=pl.BlockSpec((1, T, D), lambda b: (b, 0, 0)),
        compiler_params=pltpu.CompilerParams(
            dimension_semantics=("parallel",),        # shard batch across v7x's 2 TCs
            vmem_limit_bytes=32 * 1024 * 1024,
        ),
        cost_estimate=cost,
    )(*args)


def reference(x, p, kernel_size):
    """Faithful all-f32 plain-JAX reference of the original (inference) forward."""
    eps = 1e-5
    pad = kernel_size // 2
    B, T, D = x.shape
    inner = p["w2_T"].shape[0]
    mean = jnp.mean(x, -1, keepdims=True)
    var = jnp.mean((x - mean) ** 2, -1, keepdims=True)
    xn = (x - mean) * jax.lax.rsqrt(var + eps) * p["ln_g"] + p["ln_b"]
    y = xn @ p["w1_T"] + p["b1"]
    g = y[..., :inner] * jax.nn.sigmoid(y[..., inner:])
    gp = jnp.pad(g, ((0, 0), (pad, pad), (0, 0)))
    acc = sum(gp[:, k:k + T, :] * p["w_dw"][k] for k in range(kernel_size)) + p["b_dw"]
    z = (acc - p["bn_m"]) * jax.lax.rsqrt(p["bn_v"] + eps) * p["bn_g"] + p["bn_b"]
    z = z * jax.nn.sigmoid(z)
    return z @ p["w2_T"] + p["b2"]


def reference_matched(x, fp, kernel_size):
    """Plain-JAX version of the exact kernel math (folded params, bf16 MXU operands)."""
    eps = 1e-5
    pad = kernel_size // 2
    B, T, D = x.shape
    mean = jnp.mean(x, -1, keepdims=True)
    xc = x - mean
    var = jnp.mean(xc * xc, -1, keepdims=True)
    xn = (xc * jax.lax.rsqrt(var + eps)).astype(jnp.bfloat16)
    val = jnp.dot(xn, fp["w1a"], preferred_element_type=jnp.float32) + fp["b1a"]
    gate = jnp.dot(xn, fp["w1b"], preferred_element_type=jnp.float32) + fp["b1b"]
    g = val * jax.nn.sigmoid(gate)
    gp = jnp.pad(g, ((0, 0), (pad, pad), (0, 0)))
    z = sum(gp[:, k:k + T, :] * fp["w_dw"][k] for k in range(kernel_size)) + fp["b_dw"]
    z = z * jax.nn.sigmoid(z)
    return jnp.dot(z.astype(jnp.bfloat16), fp["w2"],
                   preferred_element_type=jnp.float32) + fp["b2"]


if __name__ == "__main__":
    B, T, D = 2, 64, 64
    expansion = 2
    inner = D * expansion
    kernel_size = 7                      # module default is 31; small here

    key = jax.random.PRNGKey(0)
    ks = jax.random.split(key, 13)
    f32 = jnp.float32
    params = dict(
        ln_g=(jax.random.normal(ks[0], (1, D), f32) * 0.1 + 1.0),
        ln_b=(jax.random.normal(ks[1], (1, D), f32) * 0.1),
        w1_T=(jax.random.normal(ks[2], (D, 2 * inner), f32) / jnp.sqrt(D)),
        b1=(jax.random.normal(ks[3], (1, 2 * inner), f32) * 0.1),
        # depthwise weight stored as (K, inner): w_dw[k, c] == torch weight[c, 0, k]
        w_dw=(jax.random.normal(ks[4], (kernel_size, inner), f32) / jnp.sqrt(kernel_size)),
        b_dw=(jax.random.normal(ks[5], (1, inner), f32) * 0.1),
        bn_g=(jax.random.normal(ks[6], (1, inner), f32) * 0.1 + 1.0),
        bn_b=(jax.random.normal(ks[7], (1, inner), f32) * 0.1),
        bn_m=(jax.random.normal(ks[8], (1, inner), f32) * 0.1),
        bn_v=(jnp.abs(jax.random.normal(ks[9], (1, inner), f32)) * 0.1 + 1.0),
        w2_T=(jax.random.normal(ks[10], (inner, D), f32) / jnp.sqrt(inner)),
        b2=(jax.random.normal(ks[11], (1, D), f32) * 0.1),
    )
    x = jax.random.normal(ks[12], (B, T, D), f32)

    out = jax.block_until_ready(conformer_conv_module(x, params, kernel_size))
    assert out.shape == (B, T, D)

    # Tight check: identical (folded-param, bf16-MXU) math in plain JAX.
    fp = fold_params(params, kernel_size)
    ref_m = reference_matched(x, fp, kernel_size)
    assert jnp.allclose(out, ref_m, rtol=1e-3, atol=1e-3), (
        f"matched-precision max err {jnp.max(jnp.abs(out - ref_m))}"
    )

    # Loose check: faithful all-f32 reference of the original module
    # (slack accounts for bf16 MXU operands in the kernel).
    ref = reference(x, params, kernel_size)
    err = jnp.max(jnp.abs(out - ref))
    assert err < 1e-1, f"f32-reference max err {err}"

    print("KERNEL_OK")
</pallas_src>

<mosaic_0001>
module attributes {stable_mosaic.version = 11 : i64} {
  func.func @_conformer_conv_kernel(%arg0: i32, %arg1: memref<1x64x64xf32, #tpu.memory_space<vmem>>, %arg2: memref<64x128xbf16, #tpu.memory_space<vmem>>, %arg3: memref<64x128xbf16, #tpu.memory_space<vmem>>, %arg4: memref<1x128xf32, #tpu.memory_space<vmem>>, %arg5: memref<1x128xf32, #tpu.memory_space<vmem>>, %arg6: memref<7x128xf32, #tpu.memory_space<vmem>>, %arg7: memref<1x128xf32, #tpu.memory_space<vmem>>, %arg8: memref<128x64xbf16, #tpu.memory_space<vmem>>, %arg9: memref<1x64xf32, #tpu.memory_space<vmem>>, %arg10: memref<1x64x64xf32, #tpu.memory_space<vmem>>) attributes {dimension_semantics = [#tpu.dimension_semantics<parallel>], iteration_bounds = array<i64: 2>, scalar_prefetch = 0 : i64, scratch_operands = 0 : i64, tpu.core_type = #tpu.core_type<tc>, window_params = [{transform_indices = @transform_0, window_bounds = array<i64: 1, 64, 64>}, {pipeline_mode = #tpu.pipeline_mode<synchronous>, transform_indices = @transform_1, window_bounds = array<i64: 64, 128>}, {pipeline_mode = #tpu.pipeline_mode<synchronous>, transform_indices = @transform_2, window_bounds = array<i64: 64, 128>}, {pipeline_mode = #tpu.pipeline_mode<synchronous>, transform_indices = @transform_3, window_bounds = array<i64: 1, 128>}, {pipeline_mode = #tpu.pipeline_mode<synchronous>, transform_indices = @transform_4, window_bounds = array<i64: 1, 128>}, {pipeline_mode = #tpu.pipeline_mode<synchronous>, transform_indices = @transform_5, window_bounds = array<i64: 7, 128>}, {pipeline_mode = #tpu.pipeline_mode<synchronous>, transform_indices = @transform_6, window_bounds = array<i64: 1, 128>}, {pipeline_mode = #tpu.pipeline_mode<synchronous>, transform_indices = @transform_7, window_bounds = array<i64: 128, 64>}, {pipeline_mode = #tpu.pipeline_mode<synchronous>, transform_indices = @transform_8, window_bounds = array<i64: 1, 64>}, {transform_indices = @transform_9, window_bounds = array<i64: 1, 64, 64>}]} {
    %c0 = arith.constant 0 : index
    %c0_0 = arith.constant 0 : index
    %c0_1 = arith.constant 0 : index
    %0 = vector.load %arg1[%c0, %c0_0, %c0_1] : memref<1x64x64xf32, #tpu.memory_space<vmem>>, vector<1x64x64xf32>
    %1 = vector.shape_cast %0 : vector<1x64x64xf32> to vector<64x64xf32>
    %cst = arith.constant dense<0.000000e+00> : vector<64xf32>
    %2 = vector.multi_reduction <add>, %1, %cst [1] : vector<64x64xf32> to vector<64xf32>
    %3 = vector.shape_cast %2 : vector<64xf32> to vector<64x1xf32>
    %cst_2 = arith.constant 6.400000e+01 : f32
    %4 = vector.broadcast %cst_2 : f32 to vector<64x1xf32>
    %5 = arith.divf %3, %4 : vector<64x1xf32>
    %6 = vector.broadcast %5 : vector<64x1xf32> to vector<64x64xf32>
    %7 = arith.subf %1, %6 : vector<64x64xf32>
    %8 = arith.mulf %7, %7 : vector<64x64xf32>
    %cst_3 = arith.constant dense<0.000000e+00> : vector<64xf32>
    %9 = vector.multi_reduction <add>, %8, %cst_3 [1] : vector<64x64xf32> to vector<64xf32>
    %10 = vector.shape_cast %9 : vector<64xf32> to vector<64x1xf32>
    %cst_4 = arith.constant 6.400000e+01 : f32
    %11 = vector.broadcast %cst_4 : f32 to vector<64x1xf32>
    %12 = arith.divf %10, %11 : vector<64x1xf32>
    %cst_5 = arith.constant 9.99999974E-6 : f32
    %13 = vector.broadcast %cst_5 : f32 to vector<64x1xf32>
    %14 = arith.addf %12, %13 : vector<64x1xf32>
    %15 = math.rsqrt %14 : vector<64x1xf32>
    %16 = vector.broadcast %15 : vector<64x1xf32> to vector<64x64xf32>
    %17 = arith.mulf %7, %16 : vector<64x64xf32>
    %18 = arith.truncf %17 : vector<64x64xf32> to vector<64x64xbf16>
    %c0_6 = arith.constant 0 : index
    %c0_7 = arith.constant 0 : index
    %19 = vector.load %arg2[%c0_6, %c0_7] : memref<64x128xbf16, #tpu.memory_space<vmem>>, vector<64x128xbf16>
    %cst_8 = arith.constant dense<0.000000e+00> : vector<64x128xf32>
    %20 = tpu.matmul %18, %19, %cst_8 {dimension_numbers = #tpu.dot_dimension_numbers<[1], [0], [0], [1], [0, 0, 1, 1], [], []>} : vector<64x64xbf16>, vector<64x128xbf16>, vector<64x128xf32> -> vector<64x128xf32>
    %c0_9 = arith.constant 0 : index
    %c0_10 = arith.constant 0 : index
    %21 = vector.load %arg4[%c0_9, %c0_10] : memref<1x128xf32, #tpu.memory_space<vmem>>, vector<1x128xf32>
    %22 = vector.broadcast %21 : vector<1x128xf32> to vector<64x128xf32>
    %23 = arith.addf %20, %22 : vector<64x128xf32>
    %c0_11 = arith.constant 0 : index
    %c0_12 = arith.constant 0 : index
    %24 = vector.load %arg3[%c0_11, %c0_12] : memref<64x128xbf16, #tpu.memory_space<vmem>>, vector<64x128xbf16>
    %cst_13 = arith.constant dense<0.000000e+00> : vector<64x128xf32>
    %25 = tpu.matmul %18, %24, %cst_13 {dimension_numbers = #tpu.dot_dimension_numbers<[1], [0], [0], [1], [0, 0, 1, 1], [], []>} : vector<64x64xbf16>, vector<64x128xbf16>, vector<64x128xf32> -> vector<64x128xf32>
    %c0_14 = arith.constant 0 : index
    %c0_15 = arith.constant 0 : index
    %26 = vector.load %arg5[%c0_14, %c0_15] : memref<1x128xf32, #tpu.memory_space<vmem>>, vector<1x128xf32>
    %27 = vector.broadcast %26 : vector<1x128xf32> to vector<64x128xf32>
    %28 = arith.addf %25, %27 : vector<64x128xf32>
    %29 = arith.negf %28 : vector<64x128xf32>
    %30 = math.exp %29 : vector<64x128xf32>
    %cst_16 = arith.constant 1.000000e+00 : f32
    %31 = vector.broadcast %cst_16 : f32 to vector<64x128xf32>
    %32 = arith.addf %31, %30 : vector<64x128xf32>
    %33 = arith.divf %31, %32 : vector<64x128xf32>
    %34 = arith.mulf %23, %33 : vector<64x128xf32>
    %35 = tpu.iota {dimensions = array<i32: 0>} : vector<64x128xi32>
    %cst_17 = arith.constant 0.000000e+00 : f32
    %36 = vector.broadcast %cst_17 : f32 to vector<64x128xf32>
    %c3_i32 = arith.constant 3 : i32
    %37 = tpu.dynamic_rotate %34 by %c3_i32 dim 0 : vector<64x128xf32>, i32 -> vector<64x128xf32>
    %c3_i32_18 = arith.constant 3 : i32
    %38 = vector.broadcast %c3_i32_18 : i32 to vector<64x128xi32>
    %39 = arith.cmpi sge, %35, %38 : vector<64x128xi32>
    %c67_i32 = arith.constant 67 : i32
    %40 = vector.broadcast %c67_i32 : i32 to vector<64x128xi32>
    %41 = arith.cmpi slt, %35, %40 : vector<64x128xi32>
    %42 = arith.andi %39, %41 : vector<64x128xi1>
    %cst_19 = arith.constant 0.000000e+00 : f32
    %43 = vector.broadcast %cst_19 : f32 to vector<64x128xf32>
    %44 = arith.select %42, %37, %43 : vector<64x128xi1>, vector<64x128xf32>
    %c0_20 = arith.constant 0 : index
    %c0_21 = arith.constant 0 : index
    %45 = vector.load %arg6[%c0_20, %c0_21] : memref<7x128xf32, #tpu.memory_space<vmem>>, vector<1x128xf32>
    %46 = vector.broadcast %45 : vector<1x128xf32> to vector<64x128xf32>
    %47 = arith.mulf %44, %46 : vector<64x128xf32>
    %48 = arith.addf %36, %47 : vector<64x128xf32>
    %c2_i32 = arith.constant 2 : i32
    %49 = tpu.dynamic_rotate %34 by %c2_i32 dim 0 : vector<64x128xf32>, i32 -> vector<64x128xf32>
    %c2_i32_22 = arith.constant 2 : i32
    %50 = vector.broadcast %c2_i32_22 : i32 to vector<64x128xi32>
    %51 = arith.cmpi sge, %35, %50 : vector<64x128xi32>
    %c66_i32 = arith.constant 66 : i32
    %52 = vector.broadcast %c66_i32 : i32 to vector<64x128xi32>
    %53 = arith.cmpi slt, %35, %52 : vector<64x128xi32>
    %54 = arith.andi %51, %53 : vector<64x128xi1>
    %cst_23 = arith.constant 0.000000e+00 : f32
    %55 = vector.broadcast %cst_23 : f32 to vector<64x128xf32>
    %56 = arith.select %54, %49, %55 : vector<64x128xi1>, vector<64x128xf32>
    %c1 = arith.constant 1 : index
    %c0_24 = arith.constant 0 : index
    %57 = vector.load %arg6[%c1, %c0_24] : memref<7x128xf32, #tpu.memory_space<vmem>>, vector<1x128xf32>
    %58 = vector.broadcast %57 : vector<1x128xf32> to vector<64x128xf32>
    %59 = arith.mulf %56, %58 : vector<64x128xf32>
    %60 = arith.addf %48, %59 : vector<64x128xf32>
    %c1_i32 = arith.constant 1 : i32
    %61 = tpu.dynamic_rotate %34 by %c1_i32 dim 0 : vector<64x128xf32>, i32 -> vector<64x128xf32>
    %c1_i32_25 = arith.constant 1 : i32
    %62 = vector.broadcast %c1_i32_25 : i32 to vector<64x128xi32>
    %63 = arith.cmpi sge, %35, %62 : vector<64x128xi32>
    %c65_i32 = arith.constant 65 : i32
    %64 = vector.broadcast %c65_i32 : i32 to vector<64x128xi32>
    %65 = arith.cmpi slt, %35, %64 : vector<64x128xi32>
    %66 = arith.andi %63, %65 : vector<64x128xi1>
    %cst_26 = arith.constant 0.000000e+00 : f32
    %67 = vector.broadcast %cst_26 : f32 to vector<64x128xf32>
    %68 = arith.select %66, %61, %67 : vector<64x128xi1>, vector<64x128xf32>
    %c2 = arith.constant 2 : index
    %c0_27 = arith.constant 0 : index
    %69 = vector.load %arg6[%c2, %c0_27] : memref<7x128xf32, #tpu.memory_space<vmem>>, vector<1x128xf32>
    %70 = vector.broadcast %69 : vector<1x128xf32> to vector<64x128xf32>
    %71 = arith.mulf %68, %70 : vector<64x128xf32>
    %72 = arith.addf %60, %71 : vector<64x128xf32>
    %c3 = arith.constant 3 : index
    %c0_28 = arith.constant 0 : index
    %73 = vector.load %arg6[%c3, %c0_28] : memref<7x128xf32, #tpu.memory_space<vmem>>, vector<1x128xf32>
    %74 = vector.broadcast %73 : vector<1x128xf32> to vector<64x128xf32>
    %75 = arith.mulf %34, %74 : vector<64x128xf32>
    %76 = arith.addf %72, %75 : vector<64x128xf32>
    %c63_i32 = arith.constant 63 : i32
    %77 = tpu.dynamic_rotate %34 by %c63_i32 dim 0 : vector<64x128xf32>, i32 -> vector<64x128xf32>
    %c-1_i32 = arith.constant -1 : i32
    %78 = vector.broadcast %c-1_i32 : i32 to vector<64x128xi32>
    %79 = arith.cmpi sge, %35, %78 : vector<64x128xi32>
    %c63_i32_29 = arith.constant 63 : i32
    %80 = vector.broadcast %c63_i32_29 : i32 to vector<64x128xi32>
    %81 = arith.cmpi slt, %35, %80 : vector<64x128xi32>
    %82 = arith.andi %79, %81 : vector<64x128xi1>
    %cst_30 = arith.constant 0.000000e+00 : f32
    %83 = vector.broadcast %cst_30 : f32 to vector<64x128xf32>
    %84 = arith.select %82, %77, %83 : vector<64x128xi1>, vector<64x128xf32>
    %c4 = arith.constant 4 : index
    %c0_31 = arith.constant 0 : index
    %85 = vector.load %arg6[%c4, %c0_31] : memref<7x128xf32, #tpu.memory_space<vmem>>, vector<1x128xf32>
    %86 = vector.broadcast %85 : vector<1x128xf32> to vector<64x128xf32>
    %87 = arith.mulf %84, %86 : vector<64x128xf32>
    %88 = arith.addf %76, %87 : vector<64x128xf32>
    %c62_i32 = arith.constant 62 : i32
    %89 = tpu.dynamic_rotate %34 by %c62_i32 dim 0 : vector<64x128xf32>, i32 -> vector<64x128xf32>
    %c-2_i32 = arith.constant -2 : i32
    %90 = vector.broadcast %c-2_i32 : i32 to vector<64x128xi32>
    %91 = arith.cmpi sge, %35, %90 : vector<64x128xi32>
    %c62_i32_32 = arith.constant 62 : i32
    %92 = vector.broadcast %c62_i32_32 : i32 to vector<64x128xi32>
    %93 = arith.cmpi slt, %35, %92 : vector<64x128xi32>
    %94 = arith.andi %91, %93 : vector<64x128xi1>
    %cst_33 = arith.constant 0.000000e+00 : f32
    %95 = vector.broadcast %cst_33 : f32 to vector<64x128xf32>
    %96 = arith.select %94, %89, %95 : vector<64x128xi1>, vector<64x128xf32>
    %c5 = arith.constant 5 : index
    %c0_34 = arith.constant 0 : index
    %97 = vector.load %arg6[%c5, %c0_34] : memref<7x128xf32, #tpu.memory_space<vmem>>, vector<1x128xf32>
    %98 = vector.broadcast %97 : vector<1x128xf32> to vector<64x128xf32>
    %99 = arith.mulf %96, %98 : vector<64x128xf32>
    %100 = arith.addf %88, %99 : vector<64x128xf32>
    %c61_i32 = arith.constant 61 : i32
    %101 = tpu.dynamic_rotate %34 by %c61_i32 dim 0 : vector<64x128xf32>, i32 -> vector<64x128xf32>
    %c-3_i32 = arith.constant -3 : i32
    %102 = vector.broadcast %c-3_i32 : i32 to vector<64x128xi32>
    %103 = arith.cmpi sge, %35, %102 : vector<64x128xi32>
    %c61_i32_35 = arith.constant 61 : i32
    %104 = vector.broadcast %c61_i32_35 : i32 to vector<64x128xi32>
    %105 = arith.cmpi slt, %35, %104 : vector<64x128xi32>
    %106 = arith.andi %103, %105 : vector<64x128xi1>
    %cst_36 = arith.constant 0.000000e+00 : f32
    %107 = vector.broadcast %cst_36 : f32 to vector<64x128xf32>
    %108 = arith.select %106, %101, %107 : vector<64x128xi1>, vector<64x128xf32>
    %c6 = arith.constant 6 : index
    %c0_37 = arith.constant 0 : index
    %109 = vector.load %arg6[%c6, %c0_37] : memref<7x128xf32, #tpu.memory_space<vmem>>, vector<1x128xf32>
    %110 = vector.broadcast %109 : vector<1x128xf32> to vector<64x128xf32>
    %111 = arith.mulf %108, %110 : vector<64x128xf32>
    %112 = arith.addf %100, %111 : vector<64x128xf32>
    %c0_38 = arith.constant 0 : index
    %c0_39 = arith.constant 0 : index
    %113 = vector.load %arg7[%c0_38, %c0_39] : memref<1x128xf32, #tpu.memory_space<vmem>>, vector<1x128xf32>
    %114 = vector.broadcast %113 : vector<1x128xf32> to vector<64x128xf32>
    %115 = arith.addf %112, %114 : vector<64x128xf32>
    %116 = arith.negf %115 : vector<64x128xf32>
    %117 = math.exp %116 : vector<64x128xf32>
    %cst_40 = arith.constant 1.000000e+00 : f32
    %118 = vector.broadcast %cst_40 : f32 to vector<64x128xf32>
    %119 = arith.addf %118, %117 : vector<64x128xf32>
    %120 = arith.divf %118, %119 : vector<64x128xf32>
    %121 = arith.mulf %115, %120 : vector<64x128xf32>
    %122 = arith.truncf %121 : vector<64x128xf32> to vector<64x128xbf16>
    %c0_41 = arith.constant 0 : index
    %c0_42 = arith.constant 0 : index
    %123 = vector.load %arg8[%c0_41, %c0_42] : memref<128x64xbf16, #tpu.memory_space<vmem>>, vector<128x64xbf16>
    %cst_43 = arith.constant dense<0.000000e+00> : vector<64x64xf32>
    %124 = tpu.matmul %122, %123, %cst_43 {dimension_numbers = #tpu.dot_dimension_numbers<[1], [0], [0], [1], [0, 0, 1, 1], [], []>} : vector<64x128xbf16>, vector<128x64xbf16>, vector<64x64xf32> -> vector<64x64xf32>
    %c0_44 = arith.constant 0 : index
    %c0_45 = arith.constant 0 : index
    %125 = vector.load %arg9[%c0_44, %c0_45] : memref<1x64xf32, #tpu.memory_space<vmem>>, vector<1x64xf32>
    %126 = vector.broadcast %125 : vector<1x64xf32> to vector<64x64xf32>
    %127 = arith.addf %124, %126 : vector<64x64xf32>
    %c0_46 = arith.constant 0 : index
    %c0_47 = arith.constant 0 : index
    %c0_48 = arith.constant 0 : index
    %128 = vector.load %arg10[%c0_46, %c0_47, %c0_48] : memref<1x64x64xf32, #tpu.memory_space<vmem>>, vector<1x64x64xf32>
    %129 = vector.shape_cast %128 : vector<1x64x64xf32> to vector<64x64xf32>
    %130 = vector.shape_cast %127 : vector<64x64xf32> to vector<1x64x64xf32>
    tpu.vector_store %arg10[%c0_46, %c0_47, %c0_48], %130 {strides = array<i32>} : memref<1x64x64xf32, #tpu.memory_space<vmem>>, vector<1x64x64xf32>,
    return
  }
  func.func @transform_0(%arg0: i32) -> (i32, i32, i32) {
    %c0_i32 = arith.constant 0 : i32
    %c0_i32_0 = arith.constant 0 : i32
    %c0_i32_1 = arith.constant 0 : i32
    return %arg0, %c0_i32, %c0_i32_0 : i32, i32, i32
  }
  func.func @transform_1(%arg0: i32) -> (i32, i32) {
    %c0_i32 = arith.constant 0 : i32
    %c0_i32_0 = arith.constant 0 : i32
    %c0_i32_1 = arith.constant 0 : i32
    return %c0_i32, %c0_i32_0 : i32, i32
  }
  func.func @transform_2(%arg0: i32) -> (i32, i32) {
    %c0_i32 = arith.constant 0 : i32
    %c0_i32_0 = arith.constant 0 : i32
    %c0_i32_1 = arith.constant 0 : i32
    return %c0_i32, %c0_i32_0 : i32, i32
  }
  func.func @transform_3(%arg0: i32) -> (i32, i32) {
    %c0_i32 = arith.constant 0 : i32
    %c0_i32_0 = arith.constant 0 : i32
    %c0_i32_1 = arith.constant 0 : i32
    return %c0_i32, %c0_i32_0 : i32, i32
  }
  func.func @transform_4(%arg0: i32) -> (i32, i32) {
    %c0_i32 = arith.constant 0 : i32
    %c0_i32_0 = arith.constant 0 : i32
    %c0_i32_1 = arith.constant 0 : i32
    return %c0_i32, %c0_i32_0 : i32, i32
  }
  func.func @transform_5(%arg0: i32) -> (i32, i32) {
    %c0_i32 = arith.constant 0 : i32
    %c0_i32_0 = arith.constant 0 : i32
    %c0_i32_1 = arith.constant 0 : i32
    return %c0_i32, %c0_i32_0 : i32, i32
  }
  func.func @transform_6(%arg0: i32) -> (i32, i32) {
    %c0_i32 = arith.constant 0 : i32
    %c0_i32_0 = arith.constant 0 : i32
    %c0_i32_1 = arith.constant 0 : i32
    return %c0_i32, %c0_i32_0 : i32, i32
  }
  func.func @transform_7(%arg0: i32) -> (i32, i32) {
    %c0_i32 = arith.constant 0 : i32
    %c0_i32_0 = arith.constant 0 : i32
    %c0_i32_1 = arith.constant 0 : i32
    return %c0_i32, %c0_i32_0 : i32, i32
  }
  func.func @transform_8(%arg0: i32) -> (i32, i32) {
    %c0_i32 = arith.constant 0 : i32
    %c0_i32_0 = arith.constant 0 : i32
    %c0_i32_1 = arith.constant 0 : i32
    return %c0_i32, %c0_i32_0 : i32, i32
  }
  func.func @transform_9(%arg0: i32) -> (i32, i32, i32) {
    %c0_i32 = arith.constant 0 : i32
    %c0_i32_0 = arith.constant 0 : i32
    %c0_i32_1 = arith.constant 0 : i32
    return %arg0, %c0_i32, %c0_i32_0 : i32, i32, i32
  }
}

</mosaic_0001>

<llo_original>
// kernel: tpu_custom_call.1
$region0: #{tpu_custom_call.1}
  #allocation0 [shape = 'u32[]', space=smem, size = 0x4, offset = 0x4, fixed_abs, tag = 'smem constant byte address 0x4 - core index']
  #allocation1 [shape = 'u32[144,128]{1,0:T(1,128)}', space=vmem, size = 0x12000, scoped, tag = 'internal scratch']
  %s0 = inlined_call_operand.hbm [shape: f32[2,64,64], index: 0, kind: input, shape index: {}]
  %s1 = inlined_call_operand.vmem [shape: bf16[64,128], index: 1, kind: input, shape index: {}]
  %s2 = inlined_call_operand.vmem [shape: bf16[64,128], index: 2, kind: input, shape index: {}]
  %s3 = inlined_call_operand.vmem [shape: f32[1,128], index: 3, kind: input, shape index: {}]
  %s4 = inlined_call_operand.vmem [shape: f32[1,128], index: 4, kind: input, shape index: {}]
  %s5 = inlined_call_operand.vmem [shape: f32[7,128], index: 5, kind: input, shape index: {}]
  %s6 = inlined_call_operand.vmem [shape: f32[1,128], index: 6, kind: input, shape index: {}]
  %s7 = inlined_call_operand.vmem [shape: bf16[128,64], index: 7, kind: input, shape index: {}]
  %s8 = inlined_call_operand.vmem [shape: f32[1,64], index: 8, kind: input, shape index: {}]
  %s9 = inlined_call_operand.hbm [shape: f32[2,64,64], index: 9, kind: output, shape index: {}]
  %s10 = sld [smem:[#allocation0]]
  $region73: #{tpu_custom_call.1} parent=0
    _
  %s12 = ssub.s32 1, %s10
  %s13 = scalar_select 0, %s12, %s10
  $region1: #{tpu_custom_call.1} parent=0
    #allocation2 [shape = 'u8[65536]{0}', space=vmem, size = 0x10000, scoped, tag = 'input window, operand 0']
    #allocation3 [shape = 's32[2]{0}', space=sflag, size = 0x8, scoped, tag = 'scoped memory for tpu_custom_call.1']
    #allocation4 [shape = 's32[2]{0}', space=sflag, size = 0x8, scoped, tag = 'scoped memory for tpu_custom_call.1']
    #allocation5 [shape = 'u8[65536]{0}', space=vmem, size = 0x10000, scoped, tag = 'output window, operand 0']
    %14 = vsyncpa [#allocation3], 0
    %s15 = scalar_lea.sflag [#allocation3], 1
    %16 = vsyncpa %s15, 0
    %17 = vsyncpa [#allocation4], 0
    %s18 = scalar_lea.sflag [#allocation4], 1
    %19 = vsyncpa %s18, 0
    loop: start=0, step=1, limit=4
    $region2: #{tpu_custom_call.1} parent=1 // loop_pre_header
      _
    $region3: #{tpu_custom_call.1} parent=1 // loop_header
      %s21 = sphi 0, %s25
      %p22 = scmp.ge.s32.totalorder %s21, 4
      %s31 = sphi 0, %s33
      %s34 = sphi 0, %s31
      %s35 = sphi 0, %s34
      %s51 = sphi 0, %s35
      %s55 = sphi 0, %s55
      %s57 = sphi 0, %s55
      %s58 = sphi 0, %s57
      %s72 = sphi 0, %s58
      %s76 = sphi 0, %s76
      %s78 = sphi 0, %s76
      %s79 = sphi 0, %s78
      %s93 = sphi 0, %s79
      %s97 = sphi 0, %s97
      %s99 = sphi 0, %s97
      %s100 = sphi 0, %s99
      %s114 = sphi 0, %s100
      %s118 = sphi 0, %s118
      %s120 = sphi 0, %s118
      %s121 = sphi 0, %s120
      %s135 = sphi 0, %s121
      %s139 = sphi 0, %s139
      %s141 = sphi 0, %s139
      %s142 = sphi 0, %s141
      %s156 = sphi 0, %s142
      %s160 = sphi 0, %s160
      %s162 = sphi 0, %s160
      %s163 = sphi 0, %s162
      %s177 = sphi 0, %s163
      %s181 = sphi 0, %s181
      %s183 = sphi 0, %s181
      %s184 = sphi 0, %s183
      %s198 = sphi 0, %s184
      %s202 = sphi 0, %s202
      %s204 = sphi 0, %s202
      %s205 = sphi 0, %s204
      %s219 = sphi 0, %s205
      %s225 = sphi 0, %s227
      %s228 = sphi 0, %s225
      %s229 = sphi 0, %s228
      %s245 = sphi 0, %s229
    $region4: #{tpu_custom_call.1} parent=1 // loop_header_branch
      %24 = sbr.rel (%p22) target = $region8
    $region5: #{tpu_custom_call.1} parent=1 // loop_body
      %s26 = ssub.s32 %s21, 1
      %s27 = ssub.s32 %s21, 2
      %s28 = sadd.s32 %s21, 1
      %s29 = ssub.s32 %s21, %s28
      %p30 = scmp.eq.s32.totalorder %s29, 0
      %s32 = sadd.s32 %s31, 1
      %s33 = scalar_select %p30, %s31, %s32
      %p36 = pneg %p30
      %p37 = scmp.eq.s32.totalorder %s21, 1
      %p38 = por %p36, %p37
      %p39 = scmp.ne.s32.totalorder %s31, %s34
      %p40 = scmp.eq.s32.totalorder %s21, 0
      %p41 = por %p39, %p40
      %p42 = scmp.ne.s32.totalorder %s31, %s34
      %p43 = scmp.eq.s32.totalorder %s26, 1
      %p44 = por %p42, %p43
      %p45 = scmp.ne.s32.totalorder %s34, %s35
      %p46 = scmp.eq.s32.totalorder %s26, 0
      %p47 = por %p45, %p46
      %p48 = scmp.ne.s32.totalorder %s34, %s35
      %p49 = scmp.eq.s32.totalorder %s27, 1
      %p50 = por %p48, %p49
      %p52 = scmp.ne.s32.totalorder %s35, %s51
      %p53 = scmp.eq.s32.totalorder %s27, 0
      %p54 = por %p52, %p53
      %s56 = sadd.s32 %s55, 1
      %p59 = scmp.eq.s32.totalorder %s21, 1
      %p60 = scmp.ne.s32.totalorder %s55, %s57
      %p61 = scmp.eq.s32.totalorder %s21, 0
      %p62 = por %p60, %p61
      %p63 = scmp.ne.s32.totalorder %s55, %s57
      %p64 = scmp.eq.s32.totalorder %s26, 1
      %p65 = por %p63, %p64
      %p66 = scmp.ne.s32.totalorder %s57, %s58
      %p67 = scmp.eq.s32.totalorder %s26, 0
      %p68 = por %p66, %p67
      %p69 = scmp.ne.s32.totalorder %s57, %s58
      %p70 = scmp.eq.s32.totalorder %s27, 1
      %p71 = por %p69, %p70
      %p73 = scmp.ne.s32.totalorder %s58, %s72
      %p74 = scmp.eq.s32.totalorder %s27, 0
      %p75 = por %p73, %p74
      %s77 = sadd.s32 %s76, 1
      %p80 = scmp.eq.s32.totalorder %s21, 1
      %p81 = scmp.ne.s32.totalorder %s76, %s78
      %p82 = scmp.eq.s32.totalorder %s21, 0
      %p83 = por %p81, %p82
      %p84 = scmp.ne.s32.totalorder %s76, %s78
      %p85 = scmp.eq.s32.totalorder %s26, 1
      %p86 = por %p84, %p85
      %p87 = scmp.ne.s32.totalorder %s78, %s79
      %p88 = scmp.eq.s32.totalorder %s26, 0
      %p89 = por %p87, %p88
      %p90 = scmp.ne.s32.totalorder %s78, %s79
      %p91 = scmp.eq.s32.totalorder %s27, 1
      %p92 = por %p90, %p91
      %p94 = scmp.ne.s32.totalorder %s79, %s93
      %p95 = scmp.eq.s32.totalorder %s27, 0
      %p96 = por %p94, %p95
      %s98 = sadd.s32 %s97, 1
      %p101 = scmp.eq.s32.totalorder %s21, 1
      %p102 = scmp.ne.s32.totalorder %s97, %s99
      %p103 = scmp.eq.s32.totalorder %s21, 0
      %p104 = por %p102, %p103
      %p105 = scmp.ne.s32.totalorder %s97, %s99
      %p106 = scmp.eq.s32.totalorder %s26, 1
      %p107 = por %p105, %p106
      %p108 = scmp.ne.s32.totalorder %s99, %s100
      %p109 = scmp.eq.s32.totalorder %s26, 0
      %p110 = por %p108, %p109
      %p111 = scmp.ne.s32.totalorder %s99, %s100
      %p112 = scmp.eq.s32.totalorder %s27, 1
      %p113 = por %p111, %p112
      %p115 = scmp.ne.s32.totalorder %s100, %s114
      %p116 = scmp.eq.s32.totalorder %s27, 0
      %p117 = por %p115, %p116
      %s119 = sadd.s32 %s118, 1
      %p122 = scmp.eq.s32.totalorder %s21, 1
      %p123 = scmp.ne.s32.totalorder %s118, %s120
      %p124 = scmp.eq.s32.totalorder %s21, 0
      %p125 = por %p123, %p124
      %p126 = scmp.ne.s32.totalorder %s118, %s120
      %p127 = scmp.eq.s32.totalorder %s26, 1
      %p128 = por %p126, %p127
      %p129 = scmp.ne.s32.totalorder %s120, %s121
      %p130 = scmp.eq.s32.totalorder %s26, 0
      %p131 = por %p129, %p130
      %p132 = scmp.ne.s32.totalorder %s120, %s121
      %p133 = scmp.eq.s32.totalorder %s27, 1
      %p134 = por %p132, %p133
      %p136 = scmp.ne.s32.totalorder %s121, %s135
      %p137 = scmp.eq.s32.totalorder %s27, 0
      %p138 = por %p136, %p137
      %s140 = sadd.s32 %s139, 1
      %p143 = scmp.eq.s32.totalorder %s21, 1
      %p144 = scmp.ne.s32.totalorder %s139, %s141
      %p145 = scmp.eq.s32.totalorder %s21, 0
      %p146 = por %p144, %p145
      %p147 = scmp.ne.s32.totalorder %s139, %s141
      %p148 = scmp.eq.s32.totalorder %s26, 1
      %p149 = por %p147, %p148
      %p150 = scmp.ne.s32.totalorder %s141, %s142
      %p151 = scmp.eq.s32.totalorder %s26, 0
      %p152 = por %p150, %p151
      %p153 = scmp.ne.s32.totalorder %s141, %s142
      %p154 = scmp.eq.s32.totalorder %s27, 1
      %p155 = por %p153, %p154
      %p157 = scmp.ne.s32.totalorder %s142, %s156
      %p158 = scmp.eq.s32.totalorder %s27, 0
      %p159 = por %p157, %p158
      %s161 = sadd.s32 %s160, 1
      %p164 = scmp.eq.s32.totalorder %s21, 1
      %p165 = scmp.ne.s32.totalorder %s160, %s162
      %p166 = scmp.eq.s32.totalorder %s21, 0
      %p167 = por %p165, %p166
      %p168 = scmp.ne.s32.totalorder %s160, %s162
      %p169 = scmp.eq.s32.totalorder %s26, 1
      %p170 = por %p168, %p169
      %p171 = scmp.ne.s32.totalorder %s162, %s163
      %p172 = scmp.eq.s32.totalorder %s26, 0
      %p173 = por %p171, %p172
      %p174 = scmp.ne.s32.totalorder %s162, %s163
      %p175 = scmp.eq.s32.totalorder %s27, 1
      %p176 = por %p174, %p175
      %p178 = scmp.ne.s32.totalorder %s163, %s177
      %p179 = scmp.eq.s32.totalorder %s27, 0
      %p180 = por %p178, %p179
      %s182 = sadd.s32 %s181, 1
      %p185 = scmp.eq.s32.totalorder %s21, 1
      %p186 = scmp.ne.s32.totalorder %s181, %s183
      %p187 = scmp.eq.s32.totalorder %s21, 0
      %p188 = por %p186, %p187
      %p189 = scmp.ne.s32.totalorder %s181, %s183
      %p190 = scmp.eq.s32.totalorder %s26, 1
      %p191 = por %p189, %p190
      %p192 = scmp.ne.s32.totalorder %s183, %s184
      %p193 = scmp.eq.s32.totalorder %s26, 0
      %p194 = por %p192, %p193
      %p195 = scmp.ne.s32.totalorder %s183, %s184
      %p196 = scmp.eq.s32.totalorder %s27, 1
      %p197 = por %p195, %p196
      %p199 = scmp.ne.s32.totalorder %s184, %s198
      %p200 = scmp.eq.s32.totalorder %s27, 0
      %p201 = por %p199, %p200
      %s203 = sadd.s32 %s202, 1
      %p206 = scmp.eq.s32.totalorder %s21, 1
      %p207 = scmp.ne.s32.totalorder %s202, %s204
      %p208 = scmp.eq.s32.totalorder %s21, 0
      %p209 = por %p207, %p208
      %p210 = scmp.ne.s32.totalorder %s202, %s204
      %p211 = scmp.eq.s32.totalorder %s26, 1
      %p212 = por %p210, %p211
      %p213 = scmp.ne.s32.totalorder %s204, %s205
      %p214 = scmp.eq.s32.totalorder %s26, 0
      %p215 = por %p213, %p214
      %p216 = scmp.ne.s32.totalorder %s204, %s205
      %p217 = scmp.eq.s32.totalorder %s27, 1
      %p218 = por %p216, %p217
      %p220 = scmp.ne.s32.totalorder %s205, %s219
      %p221 = scmp.eq.s32.totalorder %s27, 0
      %p222 = por %p220, %p221
      %s223 = ssub.s32 %s21, %s28
      %p224 = scmp.eq.s32.totalorder %s223, 0
      %s226 = sadd.s32 %s225, 1
      %s227 = scalar_select %p224, %s225, %s226
      %p230 = pneg %p224
      %p231 = scmp.eq.s32.totalorder %s21, 1
      %p232 = por %p230, %p231
      %p233 = scmp.ne.s32.totalorder %s225, %s228
      %p234 = scmp.eq.s32.totalorder %s21, 0
      %p235 = por %p233, %p234
      %p236 = scmp.ne.s32.totalorder %s225, %s228
      %p237 = scmp.eq.s32.totalorder %s26, 1
      %p238 = por %p236, %p237
      %p239 = scmp.ne.s32.totalorder %s228, %s229
      %p240 = scmp.eq.s32.totalorder %s26, 0
      %p241 = por %p239, %p240
      %p242 = scmp.ne.s32.totalorder %s228, %s229
      %p243 = scmp.eq.s32.totalorder %s27, 1
      %p244 = por %p242, %p243
      %p246 = scmp.ne.s32.totalorder %s229, %s245
      %p247 = scmp.eq.s32.totalorder %s27, 0
      %p248 = por %p246, %p247
      %p249 = scmp.le.s32.totalorder 1, %s21
      %p250 = scmp.lt.s32.totalorder %s21, 3
      %p251 = pnand %p249, %p250
      %p252 = pneg %p251
      // Predicated region
      $region9: #{tpu_custom_call.1} parent=5 // pred_check
        _
      $region10: #{tpu_custom_call.1} parent=5 // pred_check_branch
        %254 = sbr.rel (%p251) target = $region12
      $region11: #{tpu_custom_call.1} parent=5 // pred_region
        %s255 = ssub.s32 %s21, 1
        // Predicated region
        $region13: #{tpu_custom_call.1} parent=11 // pred_check
          %p256 = pneg %p68
        $region14: #{tpu_custom_call.1} parent=11 // pred_check_branch
          %258 = sbr.rel (%p256) target = $region16
        $region15: #{tpu_custom_call.1} parent=11 // pred_region
          _
        $region16: #{tpu_custom_call.1} parent=11 // pred_fallthru
          _
        // Predicated region
        $region17: #{tpu_custom_call.1} parent=11 // pred_check
          %p259 = pneg %p89
        $region18: #{tpu_custom_call.1} parent=11 // pred_check_branch
          %261 = sbr.rel (%p259) target = $region20
        $region19: #{tpu_custom_call.1} parent=11 // pred_region
          _
        $region20: #{tpu_custom_call.1} parent=11 // pred_fallthru
          _
        // Predicated region
        $region21: #{tpu_custom_call.1} parent=11 // pred_check
          %p262 = pneg %p110
        $region22: #{tpu_custom_call.1} parent=11 // pred_check_branch
          %264 = sbr.rel (%p262) target = $region24
        $region23: #{tpu_custom_call.1} parent=11 // pred_region
          _
        $region24: #{tpu_custom_call.1} parent=11 // pred_fallthru
          _
        // Predicated region
        $region25: #{tpu_custom_call.1} parent=11 // pred_check
          %p265 = pneg %p131
        $region26: #{tpu_custom_call.1} parent=11 // pred_check_branch
          %267 = sbr.rel (%p265) target = $region28
        $region27: #{tpu_custom_call.1} parent=11 // pred_region
          _
        $region28: #{tpu_custom_call.1} parent=11 // pred_fallthru
          _
        // Predicated region
        $region29: #{tpu_custom_call.1} parent=11 // pred_check
          %p268 = pneg %p152
        $region30: #{tpu_custom_call.1} parent=11 // pred_check_branch
          %270 = sbr.rel (%p268) target = $region32
        $region31: #{tpu_custom_call.1} parent=11 // pred_region
          _
        $region32: #{tpu_custom_call.1} parent=11 // pred_fallthru
          _
        // Predicated region
        $region33: #{tpu_custom_call.1} parent=11 // pred_check
          %p271 = pneg %p173
        $region34: #{tpu_custom_call.1} parent=11 // pred_check_branch
          %273 = sbr.rel (%p271) target = $region36
        $region35: #{tpu_custom_call.1} parent=11 // pred_region
          _
        $region36: #{tpu_custom_call.1} parent=11 // pred_fallthru
          _
        // Predicated region
        $region37: #{tpu_custom_call.1} parent=11 // pred_check
          %p274 = pneg %p194
        $region38: #{tpu_custom_call.1} parent=11 // pred_check_branch
          %276 = sbr.rel (%p274) target = $region40
        $region39: #{tpu_custom_call.1} parent=11 // pred_region
          _
        $region40: #{tpu_custom_call.1} parent=11 // pred_fallthru
          _
        // Predicated region
        $region41: #{tpu_custom_call.1} parent=11 // pred_check
          %p277 = pneg %p215
        $region42: #{tpu_custom_call.1} parent=11 // pred_check_branch
          %279 = sbr.rel (%p277) target = $region44
        $region43: #{tpu_custom_call.1} parent=11 // pred_region
          _
        $region44: #{tpu_custom_call.1} parent=11 // pred_fallthru
          _
      $region12: #{tpu_custom_call.1} parent=5 // pred_fallthru
        _
      %p280 = scmp.lt.s32.totalorder %s21, 2
      // Predicated region
      $region45: #{tpu_custom_call.1} parent=5 // pred_check
        %p281 = pneg %p280
      $region46: #{tpu_custom_call.1} parent=5 // pred_check_branch
        %283 = sbr.rel (%p281) target = $region48
      $region47: #{tpu_custom_call.1} parent=5 // pred_region
        // Predicated region
        $region49: #{tpu_custom_call.1} parent=47 // pred_check
          %p284 = pneg %p41
        $region50: #{tpu_custom_call.1} parent=47 // pred_check_branch
          %286 = sbr.rel (%p284) target = $region52
        $region51: #{tpu_custom_call.1} parent=47 // pred_region
          %s287 = sand.u32 %s31, 1
          %s288 = scalar_lea.sflag [#allocation3], %s287
          %s289 = sand.u32 %s31, 1
          %s290 = smul.addr %s289, 64
          %s291 = scalar_lea.vmem [#allocation2], %s290
          %s293 = ssub.s32 1024, 1024
          %294 = vsyncadd %s288, %s293
          %s295 = smul.addr %s21, 8
          %s296 = smul.addr %s295, 128
          %s297 = scalar_lea.hbm %s0, %s296
          %s298 = sshll.u32 %s291, 4
          %s299 = int_to_ptr.vmem [resolvable:$true] %s298
          %304 = dma.hbm_to_vmem [thread:$0]  %s297, 1024, %s299, %s288, 128, 128, 8
        $region52: #{tpu_custom_call.1} parent=47 // pred_fallthru
          _
      $region48: #{tpu_custom_call.1} parent=5 // pred_fallthru
        _
      %p305 = scmp.le.s32.totalorder 1, %s21
      %p306 = scmp.lt.s32.totalorder %s21, 3
      %p307 = pnand %p305, %p306
      %p308 = pneg %p307
      // Predicated region
      $region53: #{tpu_custom_call.1} parent=5 // pred_check
        _
      $region54: #{tpu_custom_call.1} parent=5 // pred_check_branch
        %310 = sbr.rel (%p307) target = $region56
      $region55: #{tpu_custom_call.1} parent=5 // pred_region
        %s311 = ssub.s32 %s21, 1
        %s312 = sand.u32 %s34, 1
        %s313 = scalar_lea.sflag [#allocation3], %s312
        %s314 = sand.u32 %s34, 1
        %s315 = smul.addr %s314, 64
        %s316 = scalar_lea.vmem [#allocation2], %s315
        // Predicated region
        $region57: #{tpu_custom_call.1} parent=55 // pred_check
          %p317 = pneg %p47
        $region58: #{tpu_custom_call.1} parent=55 // pred_check_branch
          %319 = sbr.rel (%p317) target = $region60
        $region59: #{tpu_custom_call.1} parent=55 // pred_region
          %320 = dma.done %s313, 1024
        $region60: #{tpu_custom_call.1} parent=55 // pred_fallthru
          _
        %s321 = sand.u32 %s34, 1
        %s322 = scalar_lea.sflag [#allocation3], %s321
        %s323 = sand.u32 %s34, 1
        %s324 = smul.addr %s323, 64
        %s325 = scalar_lea.vmem [#allocation2], %s324
        %p326 = pneg %p47
        %p327 = pneg %p44
        %p328 = pneg %p68
        %p329 = pneg %p65
        %p330 = pneg %p89
        %p331 = pneg %p86
        %p332 = pneg %p110
        %p333 = pneg %p107
        %p334 = pneg %p131
        %p335 = pneg %p128
        %p336 = pneg %p152
        %p337 = pneg %p149
        %p338 = pneg %p173
        %p339 = pneg %p170
        %p340 = pneg %p194
        %p341 = pneg %p191
        %p342 = pneg %p215
        %p343 = pneg %p212
        %p344 = pneg %p241
        %p345 = pneg %p238
        %s346 = sand.u32 %s228, 1
        %s347 = scalar_lea.sflag [#allocation4], %s346
        %s348 = sand.u32 %s228, 1
        %s349 = smul.addr %s348, 64
        %s350 = scalar_lea.vmem [#allocation5], %s349
        %v352 = vld [vmem:[%s316] sm:$0xff]
        %v353 = vld [vmem:[%s316 + $0x8] sm:$0xff]
        %v354 = vld [vmem:[%s316 + $0x10] sm:$0xff]
        %v355 = vld [vmem:[%s316 + $0x18] sm:$0xff]
        %v356 = vld [vmem:[%s316 + $0x20] sm:$0xff]
        %v357 = vld [vmem:[%s316 + $0x28] sm:$0xff]
        %v358 = vld [vmem:[%s316 + $0x30] sm:$0xff]
        %v359 = vld [vmem:[%s316 + $0x38] sm:$0xff]
        %vm360 = vcmask 523264
        %v361 = vsel %vm360, %v352, 0.0
        %362 = vadd.xlane.f32.xlu0 %v361
        %v363 = vpop.xlane.xlu0 %362
        %v364 = vsel %vm360, %v353, 0.0
        %365 = vadd.xlane.f32.xlu0 %v364
        %v366 = vpop.xlane.xlu0 %365
        %v367 = vsel %vm360, %v354, 0.0
        %368 = vadd.xlane.f32.xlu0 %v367
        %v369 = vpop.xlane.xlu0 %368
        %v370 = vsel %vm360, %v355, 0.0
        %371 = vadd.xlane.f32.xlu0 %v370
        %v372 = vpop.xlane.xlu0 %371
        %v373 = vsel %vm360, %v356, 0.0
        %374 = vadd.xlane.f32.xlu0 %v373
        %v375 = vpop.xlane.xlu0 %374
        %v376 = vsel %vm360, %v357, 0.0
        %377 = vadd.xlane.f32.xlu0 %v376
        %v378 = vpop.xlane.xlu0 %377
        %v379 = vsel %vm360, %v358, 0.0
        %380 = vadd.xlane.f32.xlu0 %v379
        %v381 = vpop.xlane.xlu0 %380
        %v382 = vsel %vm360, %v359, 0.0
        %383 = vadd.xlane.f32.xlu0 %v382
        %v384 = vpop.xlane.xlu0 %383
        %v385 = vrcp.pop 64.0
        %v386 = vmul.f32 %v363, %v385
        %v387 = vmul.f32 %v366, %v385
        %v388 = vmul.f32 %v369, %v385
        %v389 = vmul.f32 %v372, %v385
        %v390 = vmul.f32 %v375, %v385
        %v391 = vmul.f32 %v378, %v385
        %v392 = vmul.f32 %v381, %v385
        %v393 = vmul.f32 %v384, %v385
        %v394 = vsub.f32 %v352, %v386
        %v395 = vsub.f32 %v353, %v387
        %v396 = vsub.f32 %v354, %v388
        %v397 = vsub.f32 %v355, %v389
        %v398 = vsub.f32 %v356, %v390
        %v399 = vsub.f32 %v357, %v391
        %v400 = vsub.f32 %v358, %v392
        %v401 = vsub.f32 %v359, %v393
        %v402 = vmul.f32 %v394, %v394
        %v403 = vmul.f32 %v395, %v395
        %v404 = vmul.f32 %v396, %v396
        %v405 = vmul.f32 %v397, %v397
        %v406 = vmul.f32 %v398, %v398
        %v407 = vmul.f32 %v399, %v399
        %v408 = vmul.f32 %v400, %v400
        %v409 = vmul.f32 %v401, %v401
        %v410 = vsel %vm360, %v402, 0.0
        %411 = vadd.xlane.f32.xlu0 %v410
        %v412 = vpop.xlane.xlu0 %411
        %v413 = vsel %vm360, %v403, 0.0
        %414 = vadd.xlane.f32.xlu0 %v413
        %v415 = vpop.xlane.xlu0 %414
        %v416 = vsel %vm360, %v404, 0.0
        %417 = vadd.xlane.f32.xlu0 %v416
        %v418 = vpop.xlane.xlu0 %417
        %v419 = vsel %vm360, %v405, 0.0
        %420 = vadd.xlane.f32.xlu0 %v419
        %v421 = vpop.xlane.xlu0 %420
        %v422 = vsel %vm360, %v406, 0.0
        %423 = vadd.xlane.f32.xlu0 %v422
        %v424 = vpop.xlane.xlu0 %423
        %v425 = vsel %vm360, %v407, 0.0
        %426 = vadd.xlane.f32.xlu0 %v425
        %v427 = vpop.xlane.xlu0 %426
        %v428 = vsel %vm360, %v408, 0.0
        %429 = vadd.xlane.f32.xlu0 %v428
        %v430 = vpop.xlane.xlu0 %429
        %v431 = vsel %vm360, %v409, 0.0
        %432 = vadd.xlane.f32.xlu0 %v431
        %v433 = vpop.xlane.xlu0 %432
        %v434 = vmul.f32 %v412, %v385
        %v435 = vmul.f32 %v415, %v385
        %v436 = vmul.f32 %v418, %v385
        %v437 = vmul.f32 %v421, %v385
        %v438 = vmul.f32 %v424, %v385
        %v439 = vmul.f32 %v427, %v385
        %v440 = vmul.f32 %v430, %v385
        %v441 = vmul.f32 %v433, %v385
        %v442 = vadd.f32 %v434, 1e-05
        %v443 = vadd.f32 %v435, 1e-05
        %v444 = vadd.f32 %v436, 1e-05
        %v445 = vadd.f32 %v437, 1e-05
        %v446 = vadd.f32 %v438, 1e-05
        %v447 = vadd.f32 %v439, 1e-05
        %v448 = vadd.f32 %v440, 1e-05
        %v449 = vadd.f32 %v441, 1e-05
        %v450 = vrsqrt.pop %v442
        %v451 = vrsqrt.pop %v443
        %v452 = vrsqrt.pop %v444
        %v453 = vrsqrt.pop %v445
        %v454 = vrsqrt.pop %v446
        %v455 = vrsqrt.pop %v447
        %v456 = vrsqrt.pop %v448
        %v457 = vrsqrt.pop %v449
        %v458 = vmul.f32 %v394, %v450
        %v459 = vmul.f32 %v395, %v451
        %v460 = vmul.f32 %v396, %v452
        %v461 = vmul.f32 %v397, %v453
        %v462 = vmul.f32 %v398, %v454
        %v463 = vmul.f32 %v399, %v455
        %v464 = vmul.f32 %v400, %v456
        %v465 = vmul.f32 %v401, %v457
        %v466 = vpack.c.bf16 %v459, %v458
        %v467 = vpack.c.bf16 %v461, %v460
        %v468 = vpack.c.bf16 %v463, %v462
        %v469 = vpack.c.bf16 %v465, %v464
        %v470 = vld [vmem:[%s1] sm:$0xf]
        %v471 = vld [vmem:[%s1 + $0x4] sm:$0xf]
        %v472 = vld [vmem:[%s1 + $0x8] sm:$0xf]
        %v473 = vld [vmem:[%s1 + $0xc] sm:$0xf]
        %v474 = vld [vmem:[%s1 + $0x10] sm:$0xf]
        %v475 = vld [vmem:[%s1 + $0x14] sm:$0xf]
        %v476 = vld [vmem:[%s1 + $0x18] sm:$0xf]
        %v477 = vld [vmem:[%s1 + $0x1c] sm:$0xf]
        %v478 = vld [vmem:[%s3] sm:$0x1]
        %v480 = vlaneseq
        %v481 = vshrl.u32 %v480, 7
        %v482 = vsub.s32 0, %v481
        %v483 = vrot.slane %v478, %v482
        %v493 = vunpack.c.l.b16 %v470
        %v494 = vunpack.c.l.b16 %v471
        %v495 = vunpack.c.l.b16 %v472
        %v496 = vunpack.c.l.b16 %v473
        %v497 = vunpack.c.l.b16 %v474
        %v498 = vunpack.c.l.b16 %v475
        %v499 = vunpack.c.l.b16 %v476
        %v500 = vunpack.c.l.b16 %v477
        %v501 = vpack.c.b16 %v494, %v493
        %v502 = vpack.c.b16 %v496, %v495
        %v503 = vpack.c.b16 %v498, %v497
        %v504 = vpack.c.b16 %v500, %v499
        %v510 = vsel %vm360, %v466, 0
        %v513 = vsel %vm360, %v467, 0
        %v516 = vsel %vm360, %v468, 0
        %v519 = vsel %vm360, %v469, 0
        %521 = vmatprep.subr.bf16.mxu0 0
        %522 = vmatpush1.bf16.msra.mxu0 0
        %523 = vmatprep.subr.bf16.mxu0 0
        %524 = vmatpush1.bf16.msra.mxu0 0
        %525 = vmatprep.subr.bf16.mxu0 0
        %526 = vmatpush1.bf16.msra.mxu0 0
        %527 = vmatprep.subr.bf16.mxu0 0
        %528 = vmatpush1.bf16.msra.mxu0 0
        %529 = vmatprep.subr.bf16.mxu0 0
        %530 = vmatpush1.bf16.msra.mxu0 %v504
        %531 = vmatprep.subr.bf16.mxu0 0
        %532 = vmatpush1.bf16.msra.mxu0 %v503
        %533 = vmatprep.subr.bf16.mxu0 0
        %534 = vmatpush1.bf16.msra.mxu0 %v502
        %535 = vmatprep.subr.bf16.mxu0 0
        %536 = vmatpush1.bf16.msra.mxu0 %v501
        %537 = vmatprep.subr.bf16.mxu0 0
        %538 = vmatpush2.bf16.msra.mxu0 0
        %539 = vmatprep.subr.bf16.mxu0 0
        %540 = vmatpush2.bf16.msra.mxu0 0
        %541 = vmatprep.subr.bf16.mxu0 0
        %542 = vmatpush2.bf16.msra.mxu0 0
        %543 = vmatprep.subr.bf16.mxu0 0
        %544 = vmatpush2.bf16.msra.mxu0 0
        %545 = vmatprep.subr.bf16.mxu0 0
        %546 = vmatpush2.bf16.msra.mxu0 0
        %547 = vmatprep.subr.bf16.mxu0 0
        %548 = vmatpush2.bf16.msra.mxu0 0
        %549 = vmatprep.subr.bf16.mxu0 0
        %550 = vmatpush2.bf16.msra.mxu0 0
        %551 = vmatprep.subr.bf16.mxu0 0
        %552 = vmatpush2.bf16.msra.mxu0 0
        %553 = vmatprep.mubr.bf16.mxu0 0
        %554 = vmatmul.mubr.bf16.gmra.mxu0 %v510
        %v555 = vpop.f32.mrf.mxu0
        %v556 = vadd.f32 %v483, %v555
        %v557 = vpop.f32.mrf.mxu0
        %v558 = vpop.f32.mrf.mxu0
        %v559 = vadd.f32 %v483, %v558
        %v560 = vpop.f32.mrf.mxu0
        %561 = vmatprep.mubr.bf16.mxu0 0
        %562 = vmatmul.mubr.bf16.gmra.mxu0 %v513
        %v563 = vpop.f32.mrf.mxu0
        %v564 = vadd.f32 %v483, %v563
        %v565 = vpop.f32.mrf.mxu0
        %v566 = vpop.f32.mrf.mxu0
        %v567 = vadd.f32 %v483, %v566
        %v568 = vpop.f32.mrf.mxu0
        %569 = vmatprep.mubr.bf16.mxu0 0
        %570 = vmatmul.mubr.bf16.gmra.mxu0 %v516
        %v571 = vpop.f32.mrf.mxu0
        %v572 = vadd.f32 %v483, %v571
        %v573 = vpop.f32.mrf.mxu0
        %v574 = vpop.f32.mrf.mxu0
        %v575 = vadd.f32 %v483, %v574
        %v576 = vpop.f32.mrf.mxu0
        %577 = vmatprep.mubr.bf16.mxu0 0
        %578 = vmatmul.mubr.bf16.gmra.mxu0 %v519
        %v579 = vpop.f32.mrf.mxu0
        %v580 = vadd.f32 %v483, %v579
        %v581 = vpop.f32.mrf.mxu0
        %v582 = vpop.f32.mrf.mxu0
        %v583 = vadd.f32 %v483, %v582
        %v584 = vpop.f32.mrf.mxu0
        %585 = vdwg.mxu0
        %v586 = vld [vmem:[%s2] sm:$0xf]
        %v587 = vld [vmem:[%s2 + $0x4] sm:$0xf]
        %v588 = vld [vmem:[%s2 + $0x8] sm:$0xf]
        %v589 = vld [vmem:[%s2 + $0xc] sm:$0xf]
        %v590 = vld [vmem:[%s2 + $0x10] sm:$0xf]
        %v591 = vld [vmem:[%s2 + $0x14] sm:$0xf]
        %v592 = vld [vmem:[%s2 + $0x18] sm:$0xf]
        %v593 = vld [vmem:[%s2 + $0x1c] sm:$0xf]
        %v594 = vld [vmem:[%s4] sm:$0x1]
        %v596 = vlaneseq
        %v597 = vshrl.u32 %v596, 7
        %v598 = vsub.s32 0, %v597
        %v599 = vrot.slane %v594, %v598
        %v609 = vunpack.c.l.b16 %v586
        %v610 = vunpack.c.l.b16 %v587
        %v611 = vunpack.c.l.b16 %v588
        %v612 = vunpack.c.l.b16 %v589
        %v613 = vunpack.c.l.b16 %v590
        %v614 = vunpack.c.l.b16 %v591
        %v615 = vunpack.c.l.b16 %v592
        %v616 = vunpack.c.l.b16 %v593
        %v617 = vpack.c.b16 %v610, %v609
        %v618 = vpack.c.b16 %v612, %v611
        %v619 = vpack.c.b16 %v614, %v613
        %v620 = vpack.c.b16 %v616, %v615
        %625 = vmatprep.subr.bf16.mxu0 0
        %626 = vmatpush1.bf16.msra.mxu0 0
        %627 = vmatprep.subr.bf16.mxu0 0
        %628 = vmatpush1.bf16.msra.mxu0 0
        %629 = vmatprep.subr.bf16.mxu0 0
        %630 = vmatpush1.bf16.msra.mxu0 0
        %631 = vmatprep.subr.bf16.mxu0 0
        %632 = vmatpush1.bf16.msra.mxu0 0
        %633 = vmatprep.subr.bf16.mxu0 0
        %634 = vmatpush1.bf16.msra.mxu0 %v620
        %635 = vmatprep.subr.bf16.mxu0 0
        %636 = vmatpush1.bf16.msra.mxu0 %v619
        %637 = vmatprep.subr.bf16.mxu0 0
        %638 = vmatpush1.bf16.msra.mxu0 %v618
        %639 = vmatprep.subr.bf16.mxu0 0
        %640 = vmatpush1.bf16.msra.mxu0 %v617
        %641 = vmatprep.subr.bf16.mxu0 0
        %642 = vmatpush2.bf16.msra.mxu0 0
        %643 = vmatprep.subr.bf16.mxu0 0
        %644 = vmatpush2.bf16.msra.mxu0 0
        %645 = vmatprep.subr.bf16.mxu0 0
        %646 = vmatpush2.bf16.msra.mxu0 0
        %647 = vmatprep.subr.bf16.mxu0 0
        %648 = vmatpush2.bf16.msra.mxu0 0
        %649 = vmatprep.subr.bf16.mxu0 0
        %650 = vmatpush2.bf16.msra.mxu0 0
        %651 = vmatprep.subr.bf16.mxu0 0
        %652 = vmatpush2.bf16.msra.mxu0 0
        %653 = vmatprep.subr.bf16.mxu0 0
        %654 = vmatpush2.bf16.msra.mxu0 0
        %655 = vmatprep.subr.bf16.mxu0 0
        %656 = vmatpush2.bf16.msra.mxu0 0
        %657 = vmatprep.mubr.bf16.mxu0 0
        %658 = vmatmul.mubr.bf16.gmra.mxu0 %v510
        %v659 = vpop.f32.mrf.mxu0
        %v660 = vadd.f32 %v599, %v659
        %v661 = vpop.f32.mrf.mxu0
        %v662 = vpop.f32.mrf.mxu0
        %v663 = vadd.f32 %v599, %v662
        %v664 = vpop.f32.mrf.mxu0
        %665 = vmatprep.mubr.bf16.mxu0 0
        %666 = vmatmul.mubr.bf16.gmra.mxu0 %v513
        %v667 = vpop.f32.mrf.mxu0
        %v668 = vadd.f32 %v599, %v667
        %v669 = vpop.f32.mrf.mxu0
        %v670 = vpop.f32.mrf.mxu0
        %v671 = vadd.f32 %v599, %v670
        %v672 = vpop.f32.mrf.mxu0
        %673 = vmatprep.mubr.bf16.mxu0 0
        %674 = vmatmul.mubr.bf16.gmra.mxu0 %v516
        %v675 = vpop.f32.mrf.mxu0
        %v676 = vadd.f32 %v599, %v675
        %v677 = vpop.f32.mrf.mxu0
        %v678 = vpop.f32.mrf.mxu0
        %v679 = vadd.f32 %v599, %v678
        %v680 = vpop.f32.mrf.mxu0
        %681 = vmatprep.mubr.bf16.mxu0 0
        %682 = vmatmul.mubr.bf16.gmra.mxu0 %v519
        %v683 = vpop.f32.mrf.mxu0
        %v684 = vadd.f32 %v599, %v683
        %v685 = vpop.f32.mrf.mxu0
        %v686 = vpop.f32.mrf.mxu0
        %v687 = vadd.f32 %v599, %v686
        %v688 = vpop.f32.mrf.mxu0
        %689 = vdwg.mxu0
        %v690 = vxor.u32 %v660, 2147483648
        %v691 = vxor.u32 %v663, 2147483648
        %v692 = vxor.u32 %v668, 2147483648
        %v693 = vxor.u32 %v671, 2147483648
        %v694 = vxor.u32 %v676, 2147483648
        %v695 = vxor.u32 %v679, 2147483648
        %v696 = vxor.u32 %v684, 2147483648
        %v697 = vxor.u32 %v687, 2147483648
        %v698 = vmul.f32 %v690, 1.442695
        %v699 = vpow.pop %v698
        %v700 = vmul.f32 %v691, 1.442695
        %v701 = vpow.pop %v700
        %v702 = vmul.f32 %v692, 1.442695
        %v703 = vpow.pop %v702
        %v704 = vmul.f32 %v693, 1.442695
        %v705 = vpow.pop %v704
        %v706 = vmul.f32 %v694, 1.442695
        %v707 = vpow.pop %v706
        %v708 = vmul.f32 %v695, 1.442695
        %v709 = vpow.pop %v708
        %v710 = vmul.f32 %v696, 1.442695
        %v711 = vpow.pop %v710
        %v712 = vmul.f32 %v697, 1.442695
        %v713 = vpow.pop %v712
        %v714 = vadd.f32 %v699, 1.0
        %v715 = vadd.f32 %v701, 1.0
        %v716 = vadd.f32 %v703, 1.0
        %v717 = vadd.f32 %v705, 1.0
        %v718 = vadd.f32 %v707, 1.0
        %v719 = vadd.f32 %v709, 1.0
        %v720 = vadd.f32 %v711, 1.0
        %v721 = vadd.f32 %v713, 1.0
        %v722 = vrcp.pop %v714
        %v723 = vmul.f32 1.0, %v722
        %v724 = vrcp.pop %v715
        %v725 = vmul.f32 1.0, %v724
        %v726 = vrcp.pop %v716
        %v727 = vmul.f32 1.0, %v726
        %v728 = vrcp.pop %v717
        %v729 = vmul.f32 1.0, %v728
        %v730 = vrcp.pop %v718
        %v731 = vmul.f32 1.0, %v730
        %v732 = vrcp.pop %v719
        %v733 = vmul.f32 1.0, %v732
        %v734 = vrcp.pop %v720
        %v735 = vmul.f32 1.0, %v734
        %v736 = vrcp.pop %v721
        %v737 = vmul.f32 1.0, %v736
        %v738 = vmul.f32 %v556, %v723
        %v739 = vmul.f32 %v559, %v725
        %v740 = vmul.f32 %v564, %v727
        %v741 = vmul.f32 %v567, %v729
        %v742 = vmul.f32 %v572, %v731
        %v743 = vmul.f32 %v575, %v733
        %v744 = vmul.f32 %v580, %v735
        %v745 = vmul.f32 %v583, %v737
        %v746 = vlaneseq
        %v747 = vshrl.u32 %v746, 7
        %v748 = vadd.s32 %v747, 8
        %v749 = vadd.s32 %v747, 16
        %v750 = vadd.s32 %v747, 24
        %v751 = vadd.s32 %v747, 32
        %v752 = vadd.s32 %v747, 40
        %v753 = vadd.s32 %v747, 48
        %v754 = vadd.s32 %v747, 56
        %v755 = vrot.slane %v738, 5
        %v756 = vrot.slane %v739, 5
        %v757 = vrot.slane %v740, 5
        %v758 = vrot.slane %v741, 5
        %v759 = vrot.slane %v742, 5
        %v760 = vrot.slane %v743, 5
        %v761 = vrot.slane %v744, 5
        %v762 = vrot.slane %v745, 5
        %vm763 = vcmp.lt.s32.totalorder %v747, 3
        %v764 = vsel %vm763, %v761, %v762
        %v765 = vsel %vm763, %v760, %v761
        %v766 = vsel %vm763, %v759, %v760
        %v767 = vsel %vm763, %v758, %v759
        %v768 = vsel %vm763, %v757, %v758
        %v769 = vsel %vm763, %v756, %v757
        %v770 = vsel %vm763, %v755, %v756
        %v771 = vsel %vm763, %v762, %v755
        %vm772 = vcmp.ge.s32.totalorder %v747, 3
        %vm773 = vcmp.ge.s32.totalorder %v748, 3
        %vm774 = vcmp.ge.s32.totalorder %v749, 3
        %vm775 = vcmp.ge.s32.totalorder %v750, 3
        %vm776 = vcmp.ge.s32.totalorder %v751, 3
        %vm777 = vcmp.ge.s32.totalorder %v752, 3
        %vm778 = vcmp.ge.s32.totalorder %v753, 3
        %vm779 = vcmp.ge.s32.totalorder %v754, 3
        %vm780 = vcmp.lt.s32.totalorder %v747, 67
        %vm781 = vcmp.lt.s32.totalorder %v748, 67
        %vm782 = vcmp.lt.s32.totalorder %v749, 67
        %vm783 = vcmp.lt.s32.totalorder %v750, 67
        %vm784 = vcmp.lt.s32.totalorder %v751, 67
        %vm785 = vcmp.lt.s32.totalorder %v752, 67
        %vm786 = vcmp.lt.s32.totalorder %v753, 67
        %vm787 = vcmp.lt.s32.totalorder %v754, 67
        %vm788 = vmand %vm772, %vm780
        %vm789 = vmand %vm773, %vm781
        %vm790 = vmand %vm774, %vm782
        %vm791 = vmand %vm775, %vm783
        %vm792 = vmand %vm776, %vm784
        %vm793 = vmand %vm777, %vm785
        %vm794 = vmand %vm778, %vm786
        %vm795 = vmand %vm779, %vm787
        %v796 = vsel %vm788, %v771, 0.0
        %v797 = vsel %vm789, %v770, 0.0
        %v798 = vsel %vm790, %v769, 0.0
        %v799 = vsel %vm791, %v768, 0.0
        %v800 = vsel %vm792, %v767, 0.0
        %v801 = vsel %vm793, %v766, 0.0
        %v802 = vsel %vm794, %v765, 0.0
        %v803 = vsel %vm795, %v764, 0.0
        %v804 = vld [vmem:[%s5] sm:$0x1]
        %v805 = vlaneseq
        %v806 = vshrl.u32 %v805, 7
        %v807 = vsub.s32 0, %v806
        %v808 = vrot.slane %v804, %v807
        %v809 = vmul.f32 %v796, %v808
        %v810 = vmul.f32 %v797, %v808
        %v811 = vmul.f32 %v798, %v808
        %v812 = vmul.f32 %v799, %v808
        %v813 = vmul.f32 %v800, %v808
        %v814 = vmul.f32 %v801, %v808
        %v815 = vmul.f32 %v802, %v808
        %v816 = vmul.f32 %v803, %v808
        %v817 = vadd.f32 %v809, 0.0
        %v818 = vadd.f32 %v810, 0.0
        %v819 = vadd.f32 %v811, 0.0
        %v820 = vadd.f32 %v812, 0.0
        %v821 = vadd.f32 %v813, 0.0
        %v822 = vadd.f32 %v814, 0.0
        %v823 = vadd.f32 %v815, 0.0
        %v824 = vadd.f32 %v816, 0.0
        %v825 = vrot.slane %v738, 6
        %v826 = vrot.slane %v739, 6
        %v827 = vrot.slane %v740, 6
        %v828 = vrot.slane %v741, 6
        %v829 = vrot.slane %v742, 6
        %v830 = vrot.slane %v743, 6
        %v831 = vrot.slane %v744, 6
        %v832 = vrot.slane %v745, 6
        %vm833 = vcmp.lt.s32.totalorder %v747, 2
        %v834 = vsel %vm833, %v831, %v832
        %v835 = vsel %vm833, %v830, %v831
        %v836 = vsel %vm833, %v829, %v830
        %v837 = vsel %vm833, %v828, %v829
        %v838 = vsel %vm833, %v827, %v828
        %v839 = vsel %vm833, %v826, %v827
        %v840 = vsel %vm833, %v825, %v826
        %v841 = vsel %vm833, %v832, %v825
        %vm842 = vcmp.ge.s32.totalorder %v747, 2
        %vm843 = vcmp.ge.s32.totalorder %v748, 2
        %vm844 = vcmp.ge.s32.totalorder %v749, 2
        %vm845 = vcmp.ge.s32.totalorder %v750, 2
        %vm846 = vcmp.ge.s32.totalorder %v751, 2
        %vm847 = vcmp.ge.s32.totalorder %v752, 2
        %vm848 = vcmp.ge.s32.totalorder %v753, 2
        %vm849 = vcmp.ge.s32.totalorder %v754, 2
        %vm850 = vcmp.lt.s32.totalorder %v747, 66
        %vm851 = vcmp.lt.s32.totalorder %v748, 66
        %vm852 = vcmp.lt.s32.totalorder %v749, 66
        %vm853 = vcmp.lt.s32.totalorder %v750, 66
        %vm854 = vcmp.lt.s32.totalorder %v751, 66
        %vm855 = vcmp.lt.s32.totalorder %v752, 66
        %vm856 = vcmp.lt.s32.totalorder %v753, 66
        %vm857 = vcmp.lt.s32.totalorder %v754, 66
        %vm858 = vmand %vm842, %vm850
        %vm859 = vmand %vm843, %vm851
        %vm860 = vmand %vm844, %vm852
        %vm861 = vmand %vm845, %vm853
        %vm862 = vmand %vm846, %vm854
        %vm863 = vmand %vm847, %vm855
        %vm864 = vmand %vm848, %vm856
        %vm865 = vmand %vm849, %vm857
        %v866 = vsel %vm858, %v841, 0.0
        %v867 = vsel %vm859, %v840, 0.0
        %v868 = vsel %vm860, %v839, 0.0
        %v869 = vsel %vm861, %v838, 0.0
        %v870 = vsel %vm862, %v837, 0.0
        %v871 = vsel %vm863, %v836, 0.0
        %v872 = vsel %vm864, %v835, 0.0
        %v873 = vsel %vm865, %v834, 0.0
        %v874 = vld [vmem:[%s5 + $0x1] sm:$0x1]
        %v875 = vlaneseq
        %v876 = vshrl.u32 %v875, 7
        %v877 = vsub.s32 0, %v876
        %v878 = vrot.slane %v874, %v877
        %v879 = vmul.f32 %v866, %v878
        %v880 = vmul.f32 %v867, %v878
        %v881 = vmul.f32 %v868, %v878
        %v882 = vmul.f32 %v869, %v878
        %v883 = vmul.f32 %v870, %v878
        %v884 = vmul.f32 %v871, %v878
        %v885 = vmul.f32 %v872, %v878
        %v886 = vmul.f32 %v873, %v878
        %v887 = vadd.f32 %v817, %v879
        %v888 = vadd.f32 %v818, %v880
        %v889 = vadd.f32 %v819, %v881
        %v890 = vadd.f32 %v820, %v882
        %v891 = vadd.f32 %v821, %v883
        %v892 = vadd.f32 %v822, %v884
        %v893 = vadd.f32 %v823, %v885
        %v894 = vadd.f32 %v824, %v886
        %v895 = vrot.slane %v738, 7
        %v896 = vrot.slane %v739, 7
        %v897 = vrot.slane %v740, 7
        %v898 = vrot.slane %v741, 7
        %v899 = vrot.slane %v742, 7
        %v900 = vrot.slane %v743, 7
        %v901 = vrot.slane %v744, 7
        %v902 = vrot.slane %v745, 7
        %vm903 = vcmp.lt.s32.totalorder %v747, 1
        %v904 = vsel %vm903, %v901, %v902
        %v905 = vsel %vm903, %v900, %v901
        %v906 = vsel %vm903, %v899, %v900
        %v907 = vsel %vm903, %v898, %v899
        %v908 = vsel %vm903, %v897, %v898
        %v909 = vsel %vm903, %v896, %v897
        %v910 = vsel %vm903, %v895, %v896
        %v911 = vsel %vm903, %v902, %v895
        %vm912 = vcmp.ge.s32.totalorder %v747, 1
        %vm913 = vcmp.ge.s32.totalorder %v748, 1
        %vm914 = vcmp.ge.s32.totalorder %v749, 1
        %vm915 = vcmp.ge.s32.totalorder %v750, 1
        %vm916 = vcmp.ge.s32.totalorder %v751, 1
        %vm917 = vcmp.ge.s32.totalorder %v752, 1
        %vm918 = vcmp.ge.s32.totalorder %v753, 1
        %vm919 = vcmp.ge.s32.totalorder %v754, 1
        %vm920 = vcmp.lt.s32.totalorder %v747, 65
        %vm921 = vcmp.lt.s32.totalorder %v748, 65
        %vm922 = vcmp.lt.s32.totalorder %v749, 65
        %vm923 = vcmp.lt.s32.totalorder %v750, 65
        %vm924 = vcmp.lt.s32.totalorder %v751, 65
        %vm925 = vcmp.lt.s32.totalorder %v752, 65
        %vm926 = vcmp.lt.s32.totalorder %v753, 65
        %vm927 = vcmp.lt.s32.totalorder %v754, 65
        %vm928 = vmand %vm912, %vm920
        %vm929 = vmand %vm913, %vm921
        %vm930 = vmand %vm914, %vm922
        %vm931 = vmand %vm915, %vm923
        %vm932 = vmand %vm916, %vm924
        %vm933 = vmand %vm917, %vm925
        %vm934 = vmand %vm918, %vm926
        %vm935 = vmand %vm919, %vm927
        %v936 = vsel %vm928, %v911, 0.0
        %v937 = vsel %vm929, %v910, 0.0
        %v938 = vsel %vm930, %v909, 0.0
        %v939 = vsel %vm931, %v908, 0.0
        %v940 = vsel %vm932, %v907, 0.0
        %v941 = vsel %vm933, %v906, 0.0
        %v942 = vsel %vm934, %v905, 0.0
        %v943 = vsel %vm935, %v904, 0.0
        %v944 = vld [vmem:[%s5 + $0x2] sm:$0x1]
        %v945 = vlaneseq
        %v946 = vshrl.u32 %v945, 7
        %v947 = vsub.s32 0, %v946
        %v948 = vrot.slane %v944, %v947
        %v949 = vmul.f32 %v936, %v948
        %v950 = vmul.f32 %v937, %v948
        %v951 = vmul.f32 %v938, %v948
        %v952 = vmul.f32 %v939, %v948
        %v953 = vmul.f32 %v940, %v948
        %v954 = vmul.f32 %v941, %v948
        %v955 = vmul.f32 %v942, %v948
        %v956 = vmul.f32 %v943, %v948
        %v957 = vadd.f32 %v887, %v949
        %v958 = vadd.f32 %v888, %v950
        %v959 = vadd.f32 %v889, %v951
        %v960 = vadd.f32 %v890, %v952
        %v961 = vadd.f32 %v891, %v953
        %v962 = vadd.f32 %v892, %v954
        %v963 = vadd.f32 %v893, %v955
        %v964 = vadd.f32 %v894, %v956
        %v965 = vld [vmem:[%s5 + $0x3] sm:$0x1]
        %v966 = vlaneseq
        %v967 = vshrl.u32 %v966, 7
        %v968 = vsub.s32 0, %v967
        %v969 = vrot.slane %v965, %v968
        %v970 = vmul.f32 %v738, %v969
        %v971 = vmul.f32 %v739, %v969
        %v972 = vmul.f32 %v740, %v969
        %v973 = vmul.f32 %v741, %v969
        %v974 = vmul.f32 %v742, %v969
        %v975 = vmul.f32 %v743, %v969
        %v976 = vmul.f32 %v744, %v969
        %v977 = vmul.f32 %v745, %v969
        %v978 = vadd.f32 %v957, %v970
        %v979 = vadd.f32 %v958, %v971
        %v980 = vadd.f32 %v959, %v972
        %v981 = vadd.f32 %v960, %v973
        %v982 = vadd.f32 %v961, %v974
        %v983 = vadd.f32 %v962, %v975
        %v984 = vadd.f32 %v963, %v976
        %v985 = vadd.f32 %v964, %v977
        %v986 = vrot.slane %v738, 1
        %v987 = vrot.slane %v739, 1
        %v988 = vrot.slane %v740, 1
        %v989 = vrot.slane %v741, 1
        %v990 = vrot.slane %v742, 1
        %v991 = vrot.slane %v743, 1
        %v992 = vrot.slane %v744, 1
        %v993 = vrot.slane %v745, 1
        %vm994 = vcmp.lt.s32.totalorder %v747, 7
        %v995 = vsel %vm994, %v992, %v993
        %v996 = vsel %vm994, %v991, %v992
        %v997 = vsel %vm994, %v990, %v991
        %v998 = vsel %vm994, %v989, %v990
        %v999 = vsel %vm994, %v988, %v989
        %v1000 = vsel %vm994, %v987, %v988
        %v1001 = vsel %vm994, %v986, %v987
        %v1002 = vsel %vm994, %v993, %v986
        %vm1003 = vcmp.ge.s32.totalorder %v747, 4294967295
        %vm1004 = vcmp.ge.s32.totalorder %v748, 4294967295
        %vm1005 = vcmp.ge.s32.totalorder %v749, 4294967295
        %vm1006 = vcmp.ge.s32.totalorder %v750, 4294967295
        %vm1007 = vcmp.ge.s32.totalorder %v751, 4294967295
        %vm1008 = vcmp.ge.s32.totalorder %v752, 4294967295
        %vm1009 = vcmp.ge.s32.totalorder %v753, 4294967295
        %vm1010 = vcmp.ge.s32.totalorder %v754, 4294967295
        %vm1011 = vcmp.lt.s32.totalorder %v747, 63
        %vm1012 = vcmp.lt.s32.totalorder %v748, 63
        %vm1013 = vcmp.lt.s32.totalorder %v749, 63
        %vm1014 = vcmp.lt.s32.totalorder %v750, 63
        %vm1015 = vcmp.lt.s32.totalorder %v751, 63
        %vm1016 = vcmp.lt.s32.totalorder %v752, 63
        %vm1017 = vcmp.lt.s32.totalorder %v753, 63
        %vm1018 = vcmp.lt.s32.totalorder %v754, 63
        %vm1019 = vmand %vm1003, %vm1011
        %vm1020 = vmand %vm1004, %vm1012
        %vm1021 = vmand %vm1005, %vm1013
        %vm1022 = vmand %vm1006, %vm1014
        %vm1023 = vmand %vm1007, %vm1015
        %vm1024 = vmand %vm1008, %vm1016
        %vm1025 = vmand %vm1009, %vm1017
        %vm1026 = vmand %vm1010, %vm1018
        %v1027 = vsel %vm1019, %v1001, 0.0
        %v1028 = vsel %vm1020, %v1000, 0.0
        %v1029 = vsel %vm1021, %v999, 0.0
        %v1030 = vsel %vm1022, %v998, 0.0
        %v1031 = vsel %vm1023, %v997, 0.0
        %v1032 = vsel %vm1024, %v996, 0.0
        %v1033 = vsel %vm1025, %v995, 0.0
        %v1034 = vsel %vm1026, %v1002, 0.0
        %v1035 = vld [vmem:[%s5 + $0x4] sm:$0x1]
        %v1036 = vlaneseq
        %v1037 = vshrl.u32 %v1036, 7
        %v1038 = vsub.s32 0, %v1037
        %v1039 = vrot.slane %v1035, %v1038
        %v1040 = vmul.f32 %v1027, %v1039
        %v1041 = vmul.f32 %v1028, %v1039
        %v1042 = vmul.f32 %v1029, %v1039
        %v1043 = vmul.f32 %v1030, %v1039
        %v1044 = vmul.f32 %v1031, %v1039
        %v1045 = vmul.f32 %v1032, %v1039
        %v1046 = vmul.f32 %v1033, %v1039
        %v1047 = vmul.f32 %v1034, %v1039
        %v1048 = vadd.f32 %v978, %v1040
        %v1049 = vadd.f32 %v979, %v1041
        %v1050 = vadd.f32 %v980, %v1042
        %v1051 = vadd.f32 %v981, %v1043
        %v1052 = vadd.f32 %v982, %v1044
        %v1053 = vadd.f32 %v983, %v1045
        %v1054 = vadd.f32 %v984, %v1046
        %v1055 = vadd.f32 %v985, %v1047
        %v1056 = vrot.slane %v738, 2
        %v1057 = vrot.slane %v739, 2
        %v1058 = vrot.slane %v740, 2
        %v1059 = vrot.slane %v741, 2
        %v1060 = vrot.slane %v742, 2
        %v1061 = vrot.slane %v743, 2
        %v1062 = vrot.slane %v744, 2
        %v1063 = vrot.slane %v745, 2
        %vm1064 = vcmp.lt.s32.totalorder %v747, 6
        %v1065 = vsel %vm1064, %v1062, %v1063
        %v1066 = vsel %vm1064, %v1061, %v1062
        %v1067 = vsel %vm1064, %v1060, %v1061
        %v1068 = vsel %vm1064, %v1059, %v1060
        %v1069 = vsel %vm1064, %v1058, %v1059
        %v1070 = vsel %vm1064, %v1057, %v1058
        %v1071 = vsel %vm1064, %v1056, %v1057
        %v1072 = vsel %vm1064, %v1063, %v1056
        %vm1073 = vcmp.ge.s32.totalorder %v747, 4294967294
        %vm1074 = vcmp.ge.s32.totalorder %v748, 4294967294
        %vm1075 = vcmp.ge.s32.totalorder %v749, 4294967294
        %vm1076 = vcmp.ge.s32.totalorder %v750, 4294967294
        %vm1077 = vcmp.ge.s32.totalorder %v751, 4294967294
        %vm1078 = vcmp.ge.s32.totalorder %v752, 4294967294
        %vm1079 = vcmp.ge.s32.totalorder %v753, 4294967294
        %vm1080 = vcmp.ge.s32.totalorder %v754, 4294967294
        %vm1081 = vcmp.lt.s32.totalorder %v747, 62
        %vm1082 = vcmp.lt.s32.totalorder %v748, 62
        %vm1083 = vcmp.lt.s32.totalorder %v749, 62
        %vm1084 = vcmp.lt.s32.totalorder %v750, 62
        %vm1085 = vcmp.lt.s32.totalorder %v751, 62
        %vm1086 = vcmp.lt.s32.totalorder %v752, 62
        %vm1087 = vcmp.lt.s32.totalorder %v753, 62
        %vm1088 = vcmp.lt.s32.totalorder %v754, 62
        %vm1089 = vmand %vm1073, %vm1081
        %vm1090 = vmand %vm1074, %vm1082
        %vm1091 = vmand %vm1075, %vm1083
        %vm1092 = vmand %vm1076, %vm1084
        %vm1093 = vmand %vm1077, %vm1085
        %vm1094 = vmand %vm1078, %vm1086
        %vm1095 = vmand %vm1079, %vm1087
        %vm1096 = vmand %vm1080, %vm1088
        %v1097 = vsel %vm1089, %v1071, 0.0
        %v1098 = vsel %vm1090, %v1070, 0.0
        %v1099 = vsel %vm1091, %v1069, 0.0
        %v1100 = vsel %vm1092, %v1068, 0.0
        %v1101 = vsel %vm1093, %v1067, 0.0
        %v1102 = vsel %vm1094, %v1066, 0.0
        %v1103 = vsel %vm1095, %v1065, 0.0
        %v1104 = vsel %vm1096, %v1072, 0.0
        %v1105 = vld [vmem:[%s5 + $0x5] sm:$0x1]
        %v1106 = vlaneseq
        %v1107 = vshrl.u32 %v1106, 7
        %v1108 = vsub.s32 0, %v1107
        %v1109 = vrot.slane %v1105, %v1108
        %v1110 = vmul.f32 %v1097, %v1109
        %v1111 = vmul.f32 %v1098, %v1109
        %v1112 = vmul.f32 %v1099, %v1109
        %v1113 = vmul.f32 %v1100, %v1109
        %v1114 = vmul.f32 %v1101, %v1109
        %v1115 = vmul.f32 %v1102, %v1109
        %v1116 = vmul.f32 %v1103, %v1109
        %v1117 = vmul.f32 %v1104, %v1109
        %v1118 = vadd.f32 %v1048, %v1110
        %v1119 = vadd.f32 %v1049, %v1111
        %v1120 = vadd.f32 %v1050, %v1112
        %v1121 = vadd.f32 %v1051, %v1113
        %v1122 = vadd.f32 %v1052, %v1114
        %v1123 = vadd.f32 %v1053, %v1115
        %v1124 = vadd.f32 %v1054, %v1116
        %v1125 = vadd.f32 %v1055, %v1117
        %v1126 = vrot.slane %v738, 3
        %v1127 = vrot.slane %v739, 3
        %v1128 = vrot.slane %v740, 3
        %v1129 = vrot.slane %v741, 3
        %v1130 = vrot.slane %v742, 3
        %v1131 = vrot.slane %v743, 3
        %v1132 = vrot.slane %v744, 3
        %v1133 = vrot.slane %v745, 3
        %vm1134 = vcmp.lt.s32.totalorder %v747, 5
        %v1135 = vsel %vm1134, %v1132, %v1133
        %v1136 = vsel %vm1134, %v1131, %v1132
        %v1137 = vsel %vm1134, %v1130, %v1131
        %v1138 = vsel %vm1134, %v1129, %v1130
        %v1139 = vsel %vm1134, %v1128, %v1129
        %v1140 = vsel %vm1134, %v1127, %v1128
        %v1141 = vsel %vm1134, %v1126, %v1127
        %v1142 = vsel %vm1134, %v1133, %v1126
        %vm1143 = vcmp.ge.s32.totalorder %v747, 4294967293
        %vm1144 = vcmp.ge.s32.totalorder %v748, 4294967293
        %vm1145 = vcmp.ge.s32.totalorder %v749, 4294967293
        %vm1146 = vcmp.ge.s32.totalorder %v750, 4294967293
        %vm1147 = vcmp.ge.s32.totalorder %v751, 4294967293
        %vm1148 = vcmp.ge.s32.totalorder %v752, 4294967293
        %vm1149 = vcmp.ge.s32.totalorder %v753, 4294967293
        %vm1150 = vcmp.ge.s32.totalorder %v754, 4294967293
        %vm1151 = vcmp.lt.s32.totalorder %v747, 61
        %vm1152 = vcmp.lt.s32.totalorder %v748, 61
        %vm1153 = vcmp.lt.s32.totalorder %v749, 61
        %vm1154 = vcmp.lt.s32.totalorder %v750, 61
        %vm1155 = vcmp.lt.s32.totalorder %v751, 61
        %vm1156 = vcmp.lt.s32.totalorder %v752, 61
        %vm1157 = vcmp.lt.s32.totalorder %v753, 61
        %vm1158 = vcmp.lt.s32.totalorder %v754, 61
        %vm1159 = vmand %vm1143, %vm1151
        %vm1160 = vmand %vm1144, %vm1152
        %vm1161 = vmand %vm1145, %vm1153
        %vm1162 = vmand %vm1146, %vm1154
        %vm1163 = vmand %vm1147, %vm1155
        %vm1164 = vmand %vm1148, %vm1156
        %vm1165 = vmand %vm1149, %vm1157
        %vm1166 = vmand %vm1150, %vm1158
        %v1167 = vsel %vm1159, %v1141, 0.0
        %v1168 = vsel %vm1160, %v1140, 0.0
        %v1169 = vsel %vm1161, %v1139, 0.0
        %v1170 = vsel %vm1162, %v1138, 0.0
        %v1171 = vsel %vm1163, %v1137, 0.0
        %v1172 = vsel %vm1164, %v1136, 0.0
        %v1173 = vsel %vm1165, %v1135, 0.0
        %v1174 = vsel %vm1166, %v1142, 0.0
        %v1175 = vld [vmem:[%s5 + $0x6] sm:$0x1]
        %v1176 = vlaneseq
        %v1177 = vshrl.u32 %v1176, 7
        %v1178 = vsub.s32 0, %v1177
        %v1179 = vrot.slane %v1175, %v1178
        %v1180 = vmul.f32 %v1167, %v1179
        %v1181 = vmul.f32 %v1168, %v1179
        %v1182 = vmul.f32 %v1169, %v1179
        %v1183 = vmul.f32 %v1170, %v1179
        %v1184 = vmul.f32 %v1171, %v1179
        %v1185 = vmul.f32 %v1172, %v1179
        %v1186 = vmul.f32 %v1173, %v1179
        %v1187 = vmul.f32 %v1174, %v1179
        %v1188 = vadd.f32 %v1118, %v1180
        %v1189 = vadd.f32 %v1119, %v1181
        %v1190 = vadd.f32 %v1120, %v1182
        %v1191 = vadd.f32 %v1121, %v1183
        %v1192 = vadd.f32 %v1122, %v1184
        %v1193 = vadd.f32 %v1123, %v1185
        %v1194 = vadd.f32 %v1124, %v1186
        %v1195 = vadd.f32 %v1125, %v1187
        %v1196 = vld [vmem:[%s6] sm:$0x1]
        %v1198 = vlaneseq
        %v1199 = vshrl.u32 %v1198, 7
        %v1200 = vsub.s32 0, %v1199
        %v1201 = vrot.slane %v1196, %v1200
        %v1203 = vadd.f32 %v1188, %v1201
        %v1204 = vadd.f32 %v1189, %v1201
        %v1205 = vadd.f32 %v1190, %v1201
        %v1206 = vadd.f32 %v1191, %v1201
        %v1207 = vadd.f32 %v1192, %v1201
        %v1208 = vadd.f32 %v1193, %v1201
        %v1209 = vadd.f32 %v1194, %v1201
        %v1210 = vadd.f32 %v1195, %v1201
        %v1211 = vxor.u32 %v1203, 2147483648
        %v1212 = vxor.u32 %v1204, 2147483648
        %v1213 = vxor.u32 %v1205, 2147483648
        %v1214 = vxor.u32 %v1206, 2147483648
        %v1215 = vxor.u32 %v1207, 2147483648
        %v1216 = vxor.u32 %v1208, 2147483648
        %v1217 = vxor.u32 %v1209, 2147483648
        %v1218 = vxor.u32 %v1210, 2147483648
        %v1219 = vmul.f32 %v1211, 1.442695
        %v1220 = vpow.pop %v1219
        %v1221 = vmul.f32 %v1212, 1.442695
        %v1222 = vpow.pop %v1221
        %v1223 = vmul.f32 %v1213, 1.442695
        %v1224 = vpow.pop %v1223
        %v1225 = vmul.f32 %v1214, 1.442695
        %v1226 = vpow.pop %v1225
        %v1227 = vmul.f32 %v1215, 1.442695
        %v1228 = vpow.pop %v1227
        %v1229 = vmul.f32 %v1216, 1.442695
        %v1230 = vpow.pop %v1229
        %v1231 = vmul.f32 %v1217, 1.442695
        %v1232 = vpow.pop %v1231
        %v1233 = vmul.f32 %v1218, 1.442695
        %v1234 = vpow.pop %v1233
        %v1235 = vadd.f32 %v1220, 1.0
        %v1236 = vadd.f32 %v1222, 1.0
        %v1237 = vadd.f32 %v1224, 1.0
        %v1238 = vadd.f32 %v1226, 1.0
        %v1239 = vadd.f32 %v1228, 1.0
        %v1240 = vadd.f32 %v1230, 1.0
        %v1241 = vadd.f32 %v1232, 1.0
        %v1242 = vadd.f32 %v1234, 1.0
        %v1243 = vrcp.pop %v1235
        %v1244 = vmul.f32 1.0, %v1243
        %v1245 = vrcp.pop %v1236
        %v1246 = vmul.f32 1.0, %v1245
        %v1247 = vrcp.pop %v1237
        %v1248 = vmul.f32 1.0, %v1247
        %v1249 = vrcp.pop %v1238
        %v1250 = vmul.f32 1.0, %v1249
        %v1251 = vrcp.pop %v1239
        %v1252 = vmul.f32 1.0, %v1251
        %v1253 = vrcp.pop %v1240
        %v1254 = vmul.f32 1.0, %v1253
        %v1255 = vrcp.pop %v1241
        %v1256 = vmul.f32 1.0, %v1255
        %v1257 = vrcp.pop %v1242
        %v1258 = vmul.f32 1.0, %v1257
        %v1259 = vmul.f32 %v1203, %v1244
        %v1260 = vmul.f32 %v1204, %v1246
        %v1261 = vmul.f32 %v1205, %v1248
        %v1262 = vmul.f32 %v1206, %v1250
        %v1263 = vmul.f32 %v1207, %v1252
        %v1264 = vmul.f32 %v1208, %v1254
        %v1265 = vmul.f32 %v1209, %v1256
        %v1266 = vmul.f32 %v1210, %v1258
        %v1267 = vpack.c.bf16 %v1260, %v1259
        %v1268 = vpack.c.bf16 %v1262, %v1261
        %v1269 = vpack.c.bf16 %v1264, %v1263
        %v1270 = vpack.c.bf16 %v1266, %v1265
        %v1271 = vld [vmem:[%s7] sm:$0xf]
        %v1272 = vld [vmem:[%s7 + $0x4] sm:$0xf]
        %v1273 = vld [vmem:[%s7 + $0x8] sm:$0xf]
        %v1274 = vld [vmem:[%s7 + $0xc] sm:$0xf]
        %v1275 = vld [vmem:[%s7 + $0x10] sm:$0xf]
        %v1276 = vld [vmem:[%s7 + $0x14] sm:$0xf]
        %v1277 = vld [vmem:[%s7 + $0x18] sm:$0xf]
        %v1278 = vld [vmem:[%s7 + $0x1c] sm:$0xf]
        %v1279 = vld [vmem:[%s7 + $0x20] sm:$0xf]
        %v1280 = vld [vmem:[%s7 + $0x24] sm:$0xf]
        %v1281 = vld [vmem:[%s7 + $0x28] sm:$0xf]
        %v1282 = vld [vmem:[%s7 + $0x2c] sm:$0xf]
        %v1283 = vld [vmem:[%s7 + $0x30] sm:$0xf]
        %v1284 = vld [vmem:[%s7 + $0x34] sm:$0xf]
        %v1285 = vld [vmem:[%s7 + $0x38] sm:$0xf]
        %v1286 = vld [vmem:[%s7 + $0x3c] sm:$0xf]
        %v1287 = vld [vmem:[%s8] sm:$0x1]
        %v1289 = vlaneseq
        %v1290 = vshrl.u32 %v1289, 7
        %v1291 = vsub.s32 0, %v1290
        %v1292 = vrot.slane %v1287, %v1291
        %v1310 = vunpack.c.l.b16 %v1271
        %v1311 = vunpack.c.l.b16 %v1272
        %v1312 = vunpack.c.l.b16 %v1273
        %v1313 = vunpack.c.l.b16 %v1274
        %v1314 = vunpack.c.l.b16 %v1275
        %v1315 = vunpack.c.l.b16 %v1276
        %v1316 = vunpack.c.l.b16 %v1277
        %v1317 = vunpack.c.l.b16 %v1278
        %v1318 = vunpack.c.l.b16 %v1279
        %v1319 = vunpack.c.l.b16 %v1280
        %v1320 = vunpack.c.l.b16 %v1281
        %v1321 = vunpack.c.l.b16 %v1282
        %v1322 = vunpack.c.l.b16 %v1283
        %v1323 = vunpack.c.l.b16 %v1284
        %v1324 = vunpack.c.l.b16 %v1285
        %v1325 = vunpack.c.l.b16 %v1286
        %v1326 = vpack.c.b16 %v1311, %v1310
        %v1327 = vpack.c.b16 %v1313, %v1312
        %v1328 = vpack.c.b16 %v1315, %v1314
        %v1329 = vpack.c.b16 %v1317, %v1316
        %v1330 = vpack.c.b16 %v1319, %v1318
        %v1331 = vpack.c.b16 %v1321, %v1320
        %v1332 = vpack.c.b16 %v1323, %v1322
        %v1333 = vpack.c.b16 %v1325, %v1324
        %1342 = vmatprep.subr.bf16.mxu0 0
        %1343 = vmatpush1.bf16.msra.mxu0 %v1333
        %1344 = vmatprep.subr.bf16.mxu0 0
        %1345 = vmatpush1.bf16.msra.mxu0 %v1332
        %1346 = vmatprep.subr.bf16.mxu0 0
        %1347 = vmatpush1.bf16.msra.mxu0 %v1331
        %1348 = vmatprep.subr.bf16.mxu0 0
        %1349 = vmatpush1.bf16.msra.mxu0 %v1330
        %1350 = vmatprep.subr.bf16.mxu0 0
        %1351 = vmatpush1.bf16.msra.mxu0 %v1329
        %1352 = vmatprep.subr.bf16.mxu0 0
        %1353 = vmatpush1.bf16.msra.mxu0 %v1328
        %1354 = vmatprep.subr.bf16.mxu0 0
        %1355 = vmatpush1.bf16.msra.mxu0 %v1327
        %1356 = vmatprep.subr.bf16.mxu0 0
        %1357 = vmatpush1.bf16.msra.mxu0 %v1326
        %1358 = vmatprep.subr.bf16.mxu0 0
        %1359 = vmatpush2.bf16.msra.mxu0 0
        %1360 = vmatprep.subr.bf16.mxu0 0
        %1361 = vmatpush2.bf16.msra.mxu0 0
        %1362 = vmatprep.subr.bf16.mxu0 0
        %1363 = vmatpush2.bf16.msra.mxu0 0
        %1364 = vmatprep.subr.bf16.mxu0 0
        %1365 = vmatpush2.bf16.msra.mxu0 0
        %1366 = vmatprep.subr.bf16.mxu0 0
        %1367 = vmatpush2.bf16.msra.mxu0 0
        %1368 = vmatprep.subr.bf16.mxu0 0
        %1369 = vmatpush2.bf16.msra.mxu0 0
        %1370 = vmatprep.subr.bf16.mxu0 0
        %1371 = vmatpush2.bf16.msra.mxu0 0
        %1372 = vmatprep.subr.bf16.mxu0 0
        %1373 = vmatpush2.bf16.msra.mxu0 0
        %1374 = vmatprep.mubr.bf16.mxu0 0
        %1375 = vmatmul.mubr.bf16.gmra.mxu0 %v1267
        %v1376 = vpop.f32.mrf.mxu0
        %v1377 = vadd.f32 %v1292, %v1376
        %v1378 = vpop.f32.mrf.mxu0
        %v1379 = vpop.f32.mrf.mxu0
        %v1380 = vadd.f32 %v1292, %v1379
        %v1381 = vpop.f32.mrf.mxu0
        %1382 = vmatprep.mubr.bf16.mxu0 0
        %1383 = vmatmul.mubr.bf16.gmra.mxu0 %v1268
        %v1384 = vpop.f32.mrf.mxu0
        %v1385 = vadd.f32 %v1292, %v1384
        %v1386 = vpop.f32.mrf.mxu0
        %v1387 = vpop.f32.mrf.mxu0
        %v1388 = vadd.f32 %v1292, %v1387
        %v1389 = vpop.f32.mrf.mxu0
        %1390 = vmatprep.mubr.bf16.mxu0 0
        %1391 = vmatmul.mubr.bf16.gmra.mxu0 %v1269
        %v1392 = vpop.f32.mrf.mxu0
        %v1393 = vadd.f32 %v1292, %v1392
        %v1394 = vpop.f32.mrf.mxu0
        %v1395 = vpop.f32.mrf.mxu0
        %v1396 = vadd.f32 %v1292, %v1395
        %v1397 = vpop.f32.mrf.mxu0
        %1398 = vmatprep.mubr.bf16.mxu0 0
        %1399 = vmatmul.mubr.bf16.gmra.mxu0 %v1270
        %v1400 = vpop.f32.mrf.mxu0
        %v1401 = vadd.f32 %v1292, %v1400
        %v1402 = vpop.f32.mrf.mxu0
        %v1403 = vpop.f32.mrf.mxu0
        %v1404 = vadd.f32 %v1292, %v1403
        %v1405 = vpop.f32.mrf.mxu0
        %1406 = vdwg.mxu0
        %1407 = vst.msk [vmem:[%s350] sm:$0xff] %vm360, %v1377
        %1408 = vst.msk [vmem:[%s350 + $0x8] sm:$0xff] %vm360, %v1380
        %1409 = vst.msk [vmem:[%s350 + $0x10] sm:$0xff] %vm360, %v1385
        %1410 = vst.msk [vmem:[%s350 + $0x18] sm:$0xff] %vm360, %v1388
        %1411 = vst.msk [vmem:[%s350 + $0x20] sm:$0xff] %vm360, %v1393
        %1412 = vst.msk [vmem:[%s350 + $0x28] sm:$0xff] %vm360, %v1396
        %1413 = vst.msk [vmem:[%s350 + $0x30] sm:$0xff] %vm360, %v1401
        %1414 = vst.msk [vmem:[%s350 + $0x38] sm:$0xff] %vm360, %v1404
        %s1415 = sand.u32 %s228, 1
        %s1416 = scalar_lea.sflag [#allocation4], %s1415
        %s1417 = sand.u32 %s228, 1
        %s1418 = smul.addr %s1417, 64
        %s1419 = scalar_lea.vmem [#allocation5], %s1418
        // Predicated region
        $region61: #{tpu_custom_call.1} parent=55 // pred_check
          %p1420 = pneg %p238
        $region62: #{tpu_custom_call.1} parent=55 // pred_check_branch
          %1422 = sbr.rel (%p1420) target = $region64
        $region63: #{tpu_custom_call.1} parent=55 // pred_region
          %s1424 = ssub.s32 1024, 1024
          %1425 = vsyncadd %s1416, %s1424
          %s1426 = smul.addr %s26, 8
          %s1427 = smul.addr %s1426, 128
          %s1428 = scalar_lea.hbm %s9, %s1427
          %s1429 = sshll.u32 %s1419, 4
          %s1430 = int_to_ptr.vmem [resolvable:$true] %s1429
          %1435 = dma.vmem_to_hbm [thread:$0]  %s1430, 1024, %s1428, %s1416, 128, 128, 8
        $region64: #{tpu_custom_call.1} parent=55 // pred_fallthru
          _
      $region56: #{tpu_custom_call.1} parent=5 // pred_fallthru
        _
      %p1436 = scmp.le.s32.totalorder 2, %s21
      // Predicated region
      $region65: #{tpu_custom_call.1} parent=5 // pred_check
        %p1437 = pneg %p1436
      $region66: #{tpu_custom_call.1} parent=5 // pred_check_branch
        %1439 = sbr.rel (%p1437) target = $region68
      $region67: #{tpu_custom_call.1} parent=5 // pred_region
        %s1440 = ssub.s32 %s21, 2
        // Predicated region
        $region69: #{tpu_custom_call.1} parent=67 // pred_check
          %p1441 = pneg %p244
        $region70: #{tpu_custom_call.1} parent=67 // pred_check_branch
          %1443 = sbr.rel (%p1441) target = $region72
        $region71: #{tpu_custom_call.1} parent=67 // pred_region
          %s1444 = sand.u32 %s229, 1
          %s1445 = scalar_lea.sflag [#allocation4], %s1444
          %s1446 = sand.u32 %s229, 1
          %s1447 = smul.addr %s1446, 64
          %s1448 = scalar_lea.vmem [#allocation5], %s1447
          %1449 = dma.done %s1445, 1024
        $region72: #{tpu_custom_call.1} parent=67 // pred_fallthru
          _
      $region68: #{tpu_custom_call.1} parent=5 // pred_fallthru
        _
    $region6: #{tpu_custom_call.1} parent=1 // loop_footer
      %s25 = sadd.s32 1, %s21
    $region7: #{tpu_custom_call.1} parent=1 // loop_footer_branch
      %20 = sbr.rel target = $region3
    $region8: #{tpu_custom_call.1} parent=1 // loop_exit
      _
    %1450 = vsyncpa [#allocation3], 1
    %s1451 = scalar_lea.sflag [#allocation3], 1
    %1452 = vsyncpa %s1451, 1
    %1453 = vsyncpa [#allocation4], 1
    %s1454 = scalar_lea.sflag [#allocation4], 1
    %1455 = vsyncpa %s1454, 1

</llo_original>
